<compile_context>
chip_gen: v7x
topology: tpu7x:2x2x1
jax: 0.10.0
libtpu: 0.0.40
codegen_flags: <defaults>
</compile_context>

<pallas_src>
import functools

import jax
import jax.numpy as jnp
from jax import lax
from jax.experimental import pallas as pl
from jax.experimental.pallas import tpu as pltpu


# -----------------------------------------------------------------------------
# Fused Pallas kernel: all LSTM layers + linear/relu head + output projection
# -----------------------------------------------------------------------------
def _make_fused_kernel(T, B, H, num_layers, out_dim):
    """Builds the fused kernel for the given static configuration.

    Kernel ref order:
      x_ref (T*B, Din)                              -- time-major, flattened
      [wih_ref (Din,4H), whh_ref (H,4H), b_ref (1,4H)] * num_layers
      w1_ref (H,H), b1_ref (1,H), w2_ref, b2_ref (1,out_dim)
      ftemp_ref (B,H), out_ref (B,out_dim)          -- outputs
      seq_scr (T*B, H) f32                          -- scratch (num_layers > 1)
    Gate column order is [i, f, o, g] (permuted at init time).
    """

    def kernel(x_ref, *refs):
        idx = 0
        layer_refs = []
        for _ in range(num_layers):
            layer_refs.append((refs[idx], refs[idx + 1], refs[idx + 2]))
            idx += 3
        w1_ref, b1_ref, w2_ref, b2_ref = refs[idx:idx + 4]
        idx += 4
        ftemp_ref, out_ref = refs[idx:idx + 2]
        idx += 2
        seq_scr = refs[idx] if num_layers > 1 else None

        h = jnp.zeros((B, H), jnp.float32)

        for l in range(num_layers):
            wih_ref, whh_ref, b_ref = layer_refs[l]
            # Input sequence for this layer (previous layer's h stays in VMEM).
            if l == 0:
                seq_in = x_ref[...]
            else:
                seq_in = seq_scr[...]

            # Hoisted input projection: ONE batched MXU matmul over all steps.
            gates_x = (
                jnp.dot(seq_in.astype(wih_ref.dtype), wih_ref[...],
                        preferred_element_type=jnp.float32)
                + b_ref[...]
            )  # (T*B, 4H) f32

            h = jnp.zeros((B, H), jnp.float32)
            c = jnp.zeros((B, H), jnp.float32)
            write_seq = (l + 1 < num_layers)

            # Fully unrolled recurrence: only h_prev @ W_hh is serial.
            for t in range(T):
                g = gates_x[t * B:(t + 1) * B, :] + jnp.dot(
                    h.astype(whh_ref.dtype), whh_ref[...],
                    preferred_element_type=jnp.float32)           # (B, 4H)

                sig = jax.nn.sigmoid(g[:, :3 * H])                 # i, f, o
                i_g = sig[:, 0 * H:1 * H]
                f_g = sig[:, 1 * H:2 * H]
                o_g = sig[:, 2 * H:3 * H]
                g_g = jnp.tanh(g[:, 3 * H:4 * H])                  # g

                c = f_g * c + i_g * g_g
                h = o_g * jnp.tanh(c)

                if write_seq:
                    seq_scr[t * B:(t + 1) * B, :] = h

        # Head: relu(h @ W1 + b1), then output projection.
        f = (
            jnp.dot(h.astype(w1_ref.dtype), w1_ref[...],
                    preferred_element_type=jnp.float32)
            + b1_ref[...]
        )
        f = jnp.maximum(f, 0.0)
        ftemp_ref[...] = f

        if out_dim == 1:
            # VPU multiply + lane reduction; avoid a 1-column MXU matmul.
            # w2_ref is passed as (1, H) f32.
            out_ref[...] = (
                jnp.sum(f * w2_ref[...], axis=-1, keepdims=True) + b2_ref[...]
            )
        else:
            out_ref[...] = (
                jnp.dot(f.astype(w2_ref.dtype), w2_ref[...],
                        preferred_element_type=jnp.float32)
                + b2_ref[...]
            )

    return kernel


# -----------------------------------------------------------------------------
# Full forward pass (glue in plain JAX, whole hot path in one pallas_call)
# -----------------------------------------------------------------------------
def ef_lstm_forward(params, text_x, audio_x, video_x):
    # Early fusion: concat modalities along feature dim -> (B, T, D)
    x = jnp.concatenate([text_x, audio_x, video_x], axis=-1)
    B, T, D = x.shape

    # BatchNorm1d(num_features=seq_len) in eval mode: normalizes per sequence
    # position (dim 1) using running stats; simple per-channel affine.
    bn = params["bn"]
    inv = lax.rsqrt(bn["running_var"] + 1e-5)
    x = (x - bn["running_mean"][None, :, None]) * inv[None, :, None]
    x = x * bn["gamma"][None, :, None] + bn["beta"][None, :, None]

    # Time-major flatten so each step t owns contiguous rows [t*B, (t+1)*B).
    # bf16 matmul operands; accumulation stays f32 inside the kernel.
    x2d = jnp.transpose(x, (1, 0, 2)).reshape(T * B, D).astype(jnp.bfloat16)

    layers = params["lstm"]
    num_layers = len(layers)
    H = layers[0]["whh_t"].shape[0]
    out_dim = params["b2"].shape[-1]

    kernel = _make_fused_kernel(T=T, B=B, H=H,
                                num_layers=num_layers, out_dim=out_dim)

    inputs = [x2d]
    in_specs = [pl.BlockSpec((T * B, D), lambda: (0, 0))]
    for layer in layers:
        d_in = layer["wih_t"].shape[0]
        inputs += [layer["wih_t"], layer["whh_t"], layer["b"]]
        in_specs += [
            pl.BlockSpec((d_in, 4 * H), lambda: (0, 0)),
            pl.BlockSpec((H, 4 * H), lambda: (0, 0)),
            pl.BlockSpec((1, 4 * H), lambda: (0, 0)),
        ]

    if out_dim == 1:
        w2_arg = jnp.transpose(params["w2_t"])              # (1, H), f32, VPU path
        w2_spec = pl.BlockSpec((1, H), lambda: (0, 0))
    else:
        w2_arg = params["w2_t"].astype(jnp.bfloat16)        # (H, out_dim)
        w2_spec = pl.BlockSpec((H, out_dim), lambda: (0, 0))

    inputs += [params["w1_t"], params["b1"], w2_arg, params["b2"]]
    in_specs += [
        pl.BlockSpec((H, H), lambda: (0, 0)),
        pl.BlockSpec((1, H), lambda: (0, 0)),
        w2_spec,
        pl.BlockSpec((1, out_dim), lambda: (0, 0)),
    ]

    scratch_shapes = []
    if num_layers > 1:
        scratch_shapes.append(pltpu.VMEM((T * B, H), jnp.float32))

    # TODO(synk): PyTorch applies dropout between LSTM layers and around the
    # head in train mode; eval-mode (identity) is implemented here.
    f_temp, output = pl.pallas_call(
        kernel,
        out_shape=(
            jax.ShapeDtypeStruct((B, H), jnp.float32),
            jax.ShapeDtypeStruct((B, out_dim), jnp.float32),
        ),
        in_specs=in_specs,
        out_specs=(
            pl.BlockSpec((B, H), lambda: (0, 0)),
            pl.BlockSpec((B, out_dim), lambda: (0, 0)),
        ),
        scratch_shapes=scratch_shapes,
    )(*inputs)

    return {"M": output, "F_temp": f_temp}


# -----------------------------------------------------------------------------
# Deterministic parameter initialization (matching the module's shapes)
# -----------------------------------------------------------------------------
def init_params(key, in_size, seq_len, hidden, num_layers, output_dim):
    params = {}
    keys = iter(jax.random.split(key, 8 + 6 * num_layers))

    def uniform(k, shape, bound):
        return jax.random.uniform(
            k, shape, minval=-bound, maxval=bound, dtype=jnp.float32
        )

    def reorder_gates(w):
        # Leading axis is 4H in PyTorch order [i, f, g, o]; permute to
        # [i, f, o, g] so the kernel can split sigmoid/tanh with one boundary.
        i, f, g, o = jnp.split(w, 4, axis=0)
        return jnp.concatenate([i, f, o, g], axis=0)

    # BatchNorm1d(seq_len): fresh running stats + randomized affine params.
    params["bn"] = {
        "gamma": 1.0 + 0.1 * jax.random.normal(next(keys), (seq_len,), jnp.float32),
        "beta": 0.1 * jax.random.normal(next(keys), (seq_len,), jnp.float32),
        "running_mean": jnp.zeros((seq_len,), jnp.float32),
        "running_var": jnp.ones((seq_len,), jnp.float32),
    }

    # LSTM layers: PyTorch init is U(-1/sqrt(H), 1/sqrt(H)).
    bound = 1.0 / jnp.sqrt(hidden).astype(jnp.float32)
    lstm_layers = []
    for layer_idx in range(num_layers):
        d_in = in_size if layer_idx == 0 else hidden
        w_ih = uniform(next(keys), (4 * hidden, d_in), bound)
        w_hh = uniform(next(keys), (4 * hidden, hidden), bound)
        b_ih = uniform(next(keys), (4 * hidden,), bound)
        b_hh = uniform(next(keys), (4 * hidden,), bound)
        lstm_layers.append(
            {
                # pre-transposed + gate-reordered; bf16 operands for the MXU
                "wih_t": jnp.transpose(reorder_gates(w_ih)).astype(jnp.bfloat16),
                "whh_t": jnp.transpose(reorder_gates(w_hh)).astype(jnp.bfloat16),
                # combined bias stays f32 (added to the f32 accumulator)
                "b": reorder_gates(b_ih + b_hh)[None, :],
            }
        )
    params["lstm"] = lstm_layers

    # Linear(H, H) and out = Linear(H, output_dim), PyTorch default init.
    b1_bound = 1.0 / jnp.sqrt(hidden).astype(jnp.float32)
    params["w1_t"] = jnp.transpose(
        uniform(next(keys), (hidden, hidden), b1_bound)
    ).astype(jnp.bfloat16)
    params["b1"] = uniform(next(keys), (1, hidden), b1_bound)
    params["w2_t"] = jnp.transpose(
        uniform(next(keys), (output_dim, hidden), b1_bound)
    )  # (H, out_dim), kept f32; wrapper picks VPU (out_dim==1) or bf16 MXU path
    params["b2"] = uniform(next(keys), (1, output_dim), b1_bound)
    return params


# -----------------------------------------------------------------------------
# Demo
# -----------------------------------------------------------------------------
if __name__ == "__main__":
    B = 2            # batch
    T = 8            # seq_lens
    text_in, audio_in, video_in = 16, 8, 8
    in_size = text_in + audio_in + video_in
    hidden = 32      # hidden_dims
    num_layers = 2
    output_dim = 1   # regression mode

    key = jax.random.PRNGKey(0)
    kp, kt, ka, kv = jax.random.split(key, 4)

    params = init_params(kp, in_size, T, hidden, num_layers, output_dim)

    text_x = jax.random.normal(kt, (B, T, text_in), jnp.float32)
    audio_x = jax.random.normal(ka, (B, T, audio_in), jnp.float32)
    video_x = jax.random.normal(kv, (B, T, video_in), jnp.float32)

    fwd = jax.jit(functools.partial(ef_lstm_forward, params))
    res = fwd(text_x, audio_x, video_x)
    jax.block_until_ready(res)

    assert res["M"].shape == (B, output_dim)
    assert res["F_temp"].shape == (B, hidden)
    print("KERNEL_OK")
</pallas_src>

<mosaic_0001>
module attributes {stable_mosaic.version = 11 : i64} {
  func.func @kernel(%arg0: memref<16x32xbf16, #tpu.memory_space<vmem>>, %arg1: memref<32x128xbf16, #tpu.memory_space<vmem>>, %arg2: memref<32x128xbf16, #tpu.memory_space<vmem>>, %arg3: memref<1x128xf32, #tpu.memory_space<vmem>>, %arg4: memref<32x128xbf16, #tpu.memory_space<vmem>>, %arg5: memref<32x128xbf16, #tpu.memory_space<vmem>>, %arg6: memref<1x128xf32, #tpu.memory_space<vmem>>, %arg7: memref<32x32xbf16, #tpu.memory_space<vmem>>, %arg8: memref<1x32xf32, #tpu.memory_space<vmem>>, %arg9: memref<1x32xf32, #tpu.memory_space<vmem>>, %arg10: memref<1x1xf32, #tpu.memory_space<vmem>>, %arg11: memref<2x32xf32, #tpu.memory_space<vmem>>, %arg12: memref<2x1xf32, #tpu.memory_space<vmem>>, %arg13: memref<16x32xf32, #tpu.memory_space<vmem>>) attributes {dimension_semantics = [], scalar_prefetch = 0 : i64, scratch_operands = 1 : i64, tpu.core_type = #tpu.core_type<tc>} {
    %c0 = arith.constant 0 : index
    %c0_0 = arith.constant 0 : index
    %0 = vector.load %arg0[%c0, %c0_0] : memref<16x32xbf16, #tpu.memory_space<vmem>>, vector<16x32xbf16>
    %c0_1 = arith.constant 0 : index
    %c0_2 = arith.constant 0 : index
    %1 = vector.load %arg1[%c0_1, %c0_2] : memref<32x128xbf16, #tpu.memory_space<vmem>>, vector<32x128xbf16>
    %cst = arith.constant dense<0.000000e+00> : vector<16x128xf32>
    %2 = tpu.matmul %0, %1, %cst {dimension_numbers = #tpu.dot_dimension_numbers<[1], [0], [0], [1], [0, 0, 1, 1], [], []>} : vector<16x32xbf16>, vector<32x128xbf16>, vector<16x128xf32> -> vector<16x128xf32>
    %c0_3 = arith.constant 0 : index
    %c0_4 = arith.constant 0 : index
    %3 = vector.load %arg3[%c0_3, %c0_4] : memref<1x128xf32, #tpu.memory_space<vmem>>, vector<1x128xf32>
    %4 = vector.broadcast %3 : vector<1x128xf32> to vector<16x128xf32>
    %5 = arith.addf %2, %4 : vector<16x128xf32>
    %cst_5 = arith.constant 0.000000e+00 : f32
    %6 = vector.broadcast %cst_5 : f32 to vector<2x32xf32>
    %cst_6 = arith.constant 0.000000e+00 : f32
    %7 = vector.broadcast %cst_6 : f32 to vector<2x32xf32>
    %8 = vector.extract_strided_slice %5 {offsets = [0, 0], sizes = [2, 128], strides = [1, 1]} : vector<16x128xf32> to vector<2x128xf32>
    %9 = arith.truncf %6 : vector<2x32xf32> to vector<2x32xbf16>
    %c0_7 = arith.constant 0 : index
    %c0_8 = arith.constant 0 : index
    %10 = vector.load %arg2[%c0_7, %c0_8] : memref<32x128xbf16, #tpu.memory_space<vmem>>, vector<32x128xbf16>
    %cst_9 = arith.constant dense<0.000000e+00> : vector<2x128xf32>
    %11 = tpu.matmul %9, %10, %cst_9 {dimension_numbers = #tpu.dot_dimension_numbers<[1], [0], [0], [1], [0, 0, 1, 1], [], []>} : vector<2x32xbf16>, vector<32x128xbf16>, vector<2x128xf32> -> vector<2x128xf32>
    %12 = arith.addf %8, %11 : vector<2x128xf32>
    %13 = vector.extract_strided_slice %12 {offsets = [0, 0], sizes = [2, 96], strides = [1, 1]} : vector<2x128xf32> to vector<2x96xf32>
    %14 = arith.negf %13 : vector<2x96xf32>
    %15 = math.exp %14 : vector<2x96xf32>
    %cst_10 = arith.constant 1.000000e+00 : f32
    %16 = vector.broadcast %cst_10 : f32 to vector<2x96xf32>
    %17 = arith.addf %16, %15 : vector<2x96xf32>
    %18 = arith.divf %16, %17 : vector<2x96xf32>
    %19 = vector.extract_strided_slice %18 {offsets = [0, 0], sizes = [2, 32], strides = [1, 1]} : vector<2x96xf32> to vector<2x32xf32>
    %20 = vector.extract_strided_slice %18 {offsets = [0, 32], sizes = [2, 32], strides = [1, 1]} : vector<2x96xf32> to vector<2x32xf32>
    %21 = vector.extract_strided_slice %18 {offsets = [0, 64], sizes = [2, 32], strides = [1, 1]} : vector<2x96xf32> to vector<2x32xf32>
    %22 = vector.extract_strided_slice %12 {offsets = [0, 96], sizes = [2, 32], strides = [1, 1]} : vector<2x128xf32> to vector<2x32xf32>
    %23 = math.tanh %22 : vector<2x32xf32>
    %24 = arith.mulf %20, %7 : vector<2x32xf32>
    %25 = arith.mulf %19, %23 : vector<2x32xf32>
    %26 = arith.addf %24, %25 : vector<2x32xf32>
    %27 = math.tanh %26 : vector<2x32xf32>
    %28 = arith.mulf %21, %27 : vector<2x32xf32>
    %c0_11 = arith.constant 0 : index
    %c0_12 = arith.constant 0 : index
    %29 = vector.load %arg13[%c0_11, %c0_12] : memref<16x32xf32, #tpu.memory_space<vmem>>, vector<2x32xf32>
    tpu.vector_store %arg13[%c0_11, %c0_12], %28 {strides = array<i32>} : memref<16x32xf32, #tpu.memory_space<vmem>>, vector<2x32xf32>,
    %30 = vector.extract_strided_slice %5 {offsets = [2, 0], sizes = [2, 128], strides = [1, 1]} : vector<16x128xf32> to vector<2x128xf32>
    %31 = arith.truncf %28 : vector<2x32xf32> to vector<2x32xbf16>
    %c0_13 = arith.constant 0 : index
    %c0_14 = arith.constant 0 : index
    %32 = vector.load %arg2[%c0_13, %c0_14] : memref<32x128xbf16, #tpu.memory_space<vmem>>, vector<32x128xbf16>
    %cst_15 = arith.constant dense<0.000000e+00> : vector<2x128xf32>
    %33 = tpu.matmul %31, %32, %cst_15 {dimension_numbers = #tpu.dot_dimension_numbers<[1], [0], [0], [1], [0, 0, 1, 1], [], []>} : vector<2x32xbf16>, vector<32x128xbf16>, vector<2x128xf32> -> vector<2x128xf32>
    %34 = arith.addf %30, %33 : vector<2x128xf32>
    %35 = vector.extract_strided_slice %34 {offsets = [0, 0], sizes = [2, 96], strides = [1, 1]} : vector<2x128xf32> to vector<2x96xf32>
    %36 = arith.negf %35 : vector<2x96xf32>
    %37 = math.exp %36 : vector<2x96xf32>
    %cst_16 = arith.constant 1.000000e+00 : f32
    %38 = vector.broadcast %cst_16 : f32 to vector<2x96xf32>
    %39 = arith.addf %38, %37 : vector<2x96xf32>
    %40 = arith.divf %38, %39 : vector<2x96xf32>
    %41 = vector.extract_strided_slice %40 {offsets = [0, 0], sizes = [2, 32], strides = [1, 1]} : vector<2x96xf32> to vector<2x32xf32>
    %42 = vector.extract_strided_slice %40 {offsets = [0, 32], sizes = [2, 32], strides = [1, 1]} : vector<2x96xf32> to vector<2x32xf32>
    %43 = vector.extract_strided_slice %40 {offsets = [0, 64], sizes = [2, 32], strides = [1, 1]} : vector<2x96xf32> to vector<2x32xf32>
    %44 = vector.extract_strided_slice %34 {offsets = [0, 96], sizes = [2, 32], strides = [1, 1]} : vector<2x128xf32> to vector<2x32xf32>
    %45 = math.tanh %44 : vector<2x32xf32>
    %46 = arith.mulf %42, %26 : vector<2x32xf32>
    %47 = arith.mulf %41, %45 : vector<2x32xf32>
    %48 = arith.addf %46, %47 : vector<2x32xf32>
    %49 = math.tanh %48 : vector<2x32xf32>
    %50 = arith.mulf %43, %49 : vector<2x32xf32>
    %c2 = arith.constant 2 : index
    %c0_17 = arith.constant 0 : index
    %51 = vector.load %arg13[%c2, %c0_17] : memref<16x32xf32, #tpu.memory_space<vmem>>, vector<2x32xf32>
    tpu.vector_store %arg13[%c2, %c0_17], %50 {strides = array<i32>} : memref<16x32xf32, #tpu.memory_space<vmem>>, vector<2x32xf32>,
    %52 = vector.extract_strided_slice %5 {offsets = [4, 0], sizes = [2, 128], strides = [1, 1]} : vector<16x128xf32> to vector<2x128xf32>
    %53 = arith.truncf %50 : vector<2x32xf32> to vector<2x32xbf16>
    %c0_18 = arith.constant 0 : index
    %c0_19 = arith.constant 0 : index
    %54 = vector.load %arg2[%c0_18, %c0_19] : memref<32x128xbf16, #tpu.memory_space<vmem>>, vector<32x128xbf16>
    %cst_20 = arith.constant dense<0.000000e+00> : vector<2x128xf32>
    %55 = tpu.matmul %53, %54, %cst_20 {dimension_numbers = #tpu.dot_dimension_numbers<[1], [0], [0], [1], [0, 0, 1, 1], [], []>} : vector<2x32xbf16>, vector<32x128xbf16>, vector<2x128xf32> -> vector<2x128xf32>
    %56 = arith.addf %52, %55 : vector<2x128xf32>
    %57 = vector.extract_strided_slice %56 {offsets = [0, 0], sizes = [2, 96], strides = [1, 1]} : vector<2x128xf32> to vector<2x96xf32>
    %58 = arith.negf %57 : vector<2x96xf32>
    %59 = math.exp %58 : vector<2x96xf32>
    %cst_21 = arith.constant 1.000000e+00 : f32
    %60 = vector.broadcast %cst_21 : f32 to vector<2x96xf32>
    %61 = arith.addf %60, %59 : vector<2x96xf32>
    %62 = arith.divf %60, %61 : vector<2x96xf32>
    %63 = vector.extract_strided_slice %62 {offsets = [0, 0], sizes = [2, 32], strides = [1, 1]} : vector<2x96xf32> to vector<2x32xf32>
    %64 = vector.extract_strided_slice %62 {offsets = [0, 32], sizes = [2, 32], strides = [1, 1]} : vector<2x96xf32> to vector<2x32xf32>
    %65 = vector.extract_strided_slice %62 {offsets = [0, 64], sizes = [2, 32], strides = [1, 1]} : vector<2x96xf32> to vector<2x32xf32>
    %66 = vector.extract_strided_slice %56 {offsets = [0, 96], sizes = [2, 32], strides = [1, 1]} : vector<2x128xf32> to vector<2x32xf32>
    %67 = math.tanh %66 : vector<2x32xf32>
    %68 = arith.mulf %64, %48 : vector<2x32xf32>
    %69 = arith.mulf %63, %67 : vector<2x32xf32>
    %70 = arith.addf %68, %69 : vector<2x32xf32>
    %71 = math.tanh %70 : vector<2x32xf32>
    %72 = arith.mulf %65, %71 : vector<2x32xf32>
    %c4 = arith.constant 4 : index
    %c0_22 = arith.constant 0 : index
    %73 = vector.load %arg13[%c4, %c0_22] : memref<16x32xf32, #tpu.memory_space<vmem>>, vector<2x32xf32>
    tpu.vector_store %arg13[%c4, %c0_22], %72 {strides = array<i32>} : memref<16x32xf32, #tpu.memory_space<vmem>>, vector<2x32xf32>,
    %74 = vector.extract_strided_slice %5 {offsets = [6, 0], sizes = [2, 128], strides = [1, 1]} : vector<16x128xf32> to vector<2x128xf32>
    %75 = arith.truncf %72 : vector<2x32xf32> to vector<2x32xbf16>
    %c0_23 = arith.constant 0 : index
    %c0_24 = arith.constant 0 : index
    %76 = vector.load %arg2[%c0_23, %c0_24] : memref<32x128xbf16, #tpu.memory_space<vmem>>, vector<32x128xbf16>
    %cst_25 = arith.constant dense<0.000000e+00> : vector<2x128xf32>
    %77 = tpu.matmul %75, %76, %cst_25 {dimension_numbers = #tpu.dot_dimension_numbers<[1], [0], [0], [1], [0, 0, 1, 1], [], []>} : vector<2x32xbf16>, vector<32x128xbf16>, vector<2x128xf32> -> vector<2x128xf32>
    %78 = arith.addf %74, %77 : vector<2x128xf32>
    %79 = vector.extract_strided_slice %78 {offsets = [0, 0], sizes = [2, 96], strides = [1, 1]} : vector<2x128xf32> to vector<2x96xf32>
    %80 = arith.negf %79 : vector<2x96xf32>
    %81 = math.exp %80 : vector<2x96xf32>
    %cst_26 = arith.constant 1.000000e+00 : f32
    %82 = vector.broadcast %cst_26 : f32 to vector<2x96xf32>
    %83 = arith.addf %82, %81 : vector<2x96xf32>
    %84 = arith.divf %82, %83 : vector<2x96xf32>
    %85 = vector.extract_strided_slice %84 {offsets = [0, 0], sizes = [2, 32], strides = [1, 1]} : vector<2x96xf32> to vector<2x32xf32>
    %86 = vector.extract_strided_slice %84 {offsets = [0, 32], sizes = [2, 32], strides = [1, 1]} : vector<2x96xf32> to vector<2x32xf32>
    %87 = vector.extract_strided_slice %84 {offsets = [0, 64], sizes = [2, 32], strides = [1, 1]} : vector<2x96xf32> to vector<2x32xf32>
    %88 = vector.extract_strided_slice %78 {offsets = [0, 96], sizes = [2, 32], strides = [1, 1]} : vector<2x128xf32> to vector<2x32xf32>
    %89 = math.tanh %88 : vector<2x32xf32>
    %90 = arith.mulf %86, %70 : vector<2x32xf32>
    %91 = arith.mulf %85, %89 : vector<2x32xf32>
    %92 = arith.addf %90, %91 : vector<2x32xf32>
    %93 = math.tanh %92 : vector<2x32xf32>
    %94 = arith.mulf %87, %93 : vector<2x32xf32>
    %c6 = arith.constant 6 : index
    %c0_27 = arith.constant 0 : index
    %95 = vector.load %arg13[%c6, %c0_27] : memref<16x32xf32, #tpu.memory_space<vmem>>, vector<2x32xf32>
    tpu.vector_store %arg13[%c6, %c0_27], %94 {strides = array<i32>} : memref<16x32xf32, #tpu.memory_space<vmem>>, vector<2x32xf32>,
    %96 = vector.extract_strided_slice %5 {offsets = [8, 0], sizes = [2, 128], strides = [1, 1]} : vector<16x128xf32> to vector<2x128xf32>
    %97 = arith.truncf %94 : vector<2x32xf32> to vector<2x32xbf16>
    %c0_28 = arith.constant 0 : index
    %c0_29 = arith.constant 0 : index
    %98 = vector.load %arg2[%c0_28, %c0_29] : memref<32x128xbf16, #tpu.memory_space<vmem>>, vector<32x128xbf16>
    %cst_30 = arith.constant dense<0.000000e+00> : vector<2x128xf32>
    %99 = tpu.matmul %97, %98, %cst_30 {dimension_numbers = #tpu.dot_dimension_numbers<[1], [0], [0], [1], [0, 0, 1, 1], [], []>} : vector<2x32xbf16>, vector<32x128xbf16>, vector<2x128xf32> -> vector<2x128xf32>
    %100 = arith.addf %96, %99 : vector<2x128xf32>
    %101 = vector.extract_strided_slice %100 {offsets = [0, 0], sizes = [2, 96], strides = [1, 1]} : vector<2x128xf32> to vector<2x96xf32>
    %102 = arith.negf %101 : vector<2x96xf32>
    %103 = math.exp %102 : vector<2x96xf32>
    %cst_31 = arith.constant 1.000000e+00 : f32
    %104 = vector.broadcast %cst_31 : f32 to vector<2x96xf32>
    %105 = arith.addf %104, %103 : vector<2x96xf32>
    %106 = arith.divf %104, %105 : vector<2x96xf32>
    %107 = vector.extract_strided_slice %106 {offsets = [0, 0], sizes = [2, 32], strides = [1, 1]} : vector<2x96xf32> to vector<2x32xf32>
    %108 = vector.extract_strided_slice %106 {offsets = [0, 32], sizes = [2, 32], strides = [1, 1]} : vector<2x96xf32> to vector<2x32xf32>
    %109 = vector.extract_strided_slice %106 {offsets = [0, 64], sizes = [2, 32], strides = [1, 1]} : vector<2x96xf32> to vector<2x32xf32>
    %110 = vector.extract_strided_slice %100 {offsets = [0, 96], sizes = [2, 32], strides = [1, 1]} : vector<2x128xf32> to vector<2x32xf32>
    %111 = math.tanh %110 : vector<2x32xf32>
    %112 = arith.mulf %108, %92 : vector<2x32xf32>
    %113 = arith.mulf %107, %111 : vector<2x32xf32>
    %114 = arith.addf %112, %113 : vector<2x32xf32>
    %115 = math.tanh %114 : vector<2x32xf32>
    %116 = arith.mulf %109, %115 : vector<2x32xf32>
    %c8 = arith.constant 8 : index
    %c0_32 = arith.constant 0 : index
    %117 = vector.load %arg13[%c8, %c0_32] : memref<16x32xf32, #tpu.memory_space<vmem>>, vector<2x32xf32>
    tpu.vector_store %arg13[%c8, %c0_32], %116 {strides = array<i32>} : memref<16x32xf32, #tpu.memory_space<vmem>>, vector<2x32xf32>,
    %118 = vector.extract_strided_slice %5 {offsets = [10, 0], sizes = [2, 128], strides = [1, 1]} : vector<16x128xf32> to vector<2x128xf32>
    %119 = arith.truncf %116 : vector<2x32xf32> to vector<2x32xbf16>
    %c0_33 = arith.constant 0 : index
    %c0_34 = arith.constant 0 : index
    %120 = vector.load %arg2[%c0_33, %c0_34] : memref<32x128xbf16, #tpu.memory_space<vmem>>, vector<32x128xbf16>
    %cst_35 = arith.constant dense<0.000000e+00> : vector<2x128xf32>
    %121 = tpu.matmul %119, %120, %cst_35 {dimension_numbers = #tpu.dot_dimension_numbers<[1], [0], [0], [1], [0, 0, 1, 1], [], []>} : vector<2x32xbf16>, vector<32x128xbf16>, vector<2x128xf32> -> vector<2x128xf32>
    %122 = arith.addf %118, %121 : vector<2x128xf32>
    %123 = vector.extract_strided_slice %122 {offsets = [0, 0], sizes = [2, 96], strides = [1, 1]} : vector<2x128xf32> to vector<2x96xf32>
    %124 = arith.negf %123 : vector<2x96xf32>
    %125 = math.exp %124 : vector<2x96xf32>
    %cst_36 = arith.constant 1.000000e+00 : f32
    %126 = vector.broadcast %cst_36 : f32 to vector<2x96xf32>
    %127 = arith.addf %126, %125 : vector<2x96xf32>
    %128 = arith.divf %126, %127 : vector<2x96xf32>
    %129 = vector.extract_strided_slice %128 {offsets = [0, 0], sizes = [2, 32], strides = [1, 1]} : vector<2x96xf32> to vector<2x32xf32>
    %130 = vector.extract_strided_slice %128 {offsets = [0, 32], sizes = [2, 32], strides = [1, 1]} : vector<2x96xf32> to vector<2x32xf32>
    %131 = vector.extract_strided_slice %128 {offsets = [0, 64], sizes = [2, 32], strides = [1, 1]} : vector<2x96xf32> to vector<2x32xf32>
    %132 = vector.extract_strided_slice %122 {offsets = [0, 96], sizes = [2, 32], strides = [1, 1]} : vector<2x128xf32> to vector<2x32xf32>
    %133 = math.tanh %132 : vector<2x32xf32>
    %134 = arith.mulf %130, %114 : vector<2x32xf32>
    %135 = arith.mulf %129, %133 : vector<2x32xf32>
    %136 = arith.addf %134, %135 : vector<2x32xf32>
    %137 = math.tanh %136 : vector<2x32xf32>
    %138 = arith.mulf %131, %137 : vector<2x32xf32>
    %c10 = arith.constant 10 : index
    %c0_37 = arith.constant 0 : index
    %139 = vector.load %arg13[%c10, %c0_37] : memref<16x32xf32, #tpu.memory_space<vmem>>, vector<2x32xf32>
    tpu.vector_store %arg13[%c10, %c0_37], %138 {strides = array<i32>} : memref<16x32xf32, #tpu.memory_space<vmem>>, vector<2x32xf32>,
    %140 = vector.extract_strided_slice %5 {offsets = [12, 0], sizes = [2, 128], strides = [1, 1]} : vector<16x128xf32> to vector<2x128xf32>
    %141 = arith.truncf %138 : vector<2x32xf32> to vector<2x32xbf16>
    %c0_38 = arith.constant 0 : index
    %c0_39 = arith.constant 0 : index
    %142 = vector.load %arg2[%c0_38, %c0_39] : memref<32x128xbf16, #tpu.memory_space<vmem>>, vector<32x128xbf16>
    %cst_40 = arith.constant dense<0.000000e+00> : vector<2x128xf32>
    %143 = tpu.matmul %141, %142, %cst_40 {dimension_numbers = #tpu.dot_dimension_numbers<[1], [0], [0], [1], [0, 0, 1, 1], [], []>} : vector<2x32xbf16>, vector<32x128xbf16>, vector<2x128xf32> -> vector<2x128xf32>
    %144 = arith.addf %140, %143 : vector<2x128xf32>
    %145 = vector.extract_strided_slice %144 {offsets = [0, 0], sizes = [2, 96], strides = [1, 1]} : vector<2x128xf32> to vector<2x96xf32>
    %146 = arith.negf %145 : vector<2x96xf32>
    %147 = math.exp %146 : vector<2x96xf32>
    %cst_41 = arith.constant 1.000000e+00 : f32
    %148 = vector.broadcast %cst_41 : f32 to vector<2x96xf32>
    %149 = arith.addf %148, %147 : vector<2x96xf32>
    %150 = arith.divf %148, %149 : vector<2x96xf32>
    %151 = vector.extract_strided_slice %150 {offsets = [0, 0], sizes = [2, 32], strides = [1, 1]} : vector<2x96xf32> to vector<2x32xf32>
    %152 = vector.extract_strided_slice %150 {offsets = [0, 32], sizes = [2, 32], strides = [1, 1]} : vector<2x96xf32> to vector<2x32xf32>
    %153 = vector.extract_strided_slice %150 {offsets = [0, 64], sizes = [2, 32], strides = [1, 1]} : vector<2x96xf32> to vector<2x32xf32>
    %154 = vector.extract_strided_slice %144 {offsets = [0, 96], sizes = [2, 32], strides = [1, 1]} : vector<2x128xf32> to vector<2x32xf32>
    %155 = math.tanh %154 : vector<2x32xf32>
    %156 = arith.mulf %152, %136 : vector<2x32xf32>
    %157 = arith.mulf %151, %155 : vector<2x32xf32>
    %158 = arith.addf %156, %157 : vector<2x32xf32>
    %159 = math.tanh %158 : vector<2x32xf32>
    %160 = arith.mulf %153, %159 : vector<2x32xf32>
    %c12 = arith.constant 12 : index
    %c0_42 = arith.constant 0 : index
    %161 = vector.load %arg13[%c12, %c0_42] : memref<16x32xf32, #tpu.memory_space<vmem>>, vector<2x32xf32>
    tpu.vector_store %arg13[%c12, %c0_42], %160 {strides = array<i32>} : memref<16x32xf32, #tpu.memory_space<vmem>>, vector<2x32xf32>,
    %162 = vector.extract_strided_slice %5 {offsets = [14, 0], sizes = [2, 128], strides = [1, 1]} : vector<16x128xf32> to vector<2x128xf32>
    %163 = arith.truncf %160 : vector<2x32xf32> to vector<2x32xbf16>
    %c0_43 = arith.constant 0 : index
    %c0_44 = arith.constant 0 : index
    %164 = vector.load %arg2[%c0_43, %c0_44] : memref<32x128xbf16, #tpu.memory_space<vmem>>, vector<32x128xbf16>
    %cst_45 = arith.constant dense<0.000000e+00> : vector<2x128xf32>
    %165 = tpu.matmul %163, %164, %cst_45 {dimension_numbers = #tpu.dot_dimension_numbers<[1], [0], [0], [1], [0, 0, 1, 1], [], []>} : vector<2x32xbf16>, vector<32x128xbf16>, vector<2x128xf32> -> vector<2x128xf32>
    %166 = arith.addf %162, %165 : vector<2x128xf32>
    %167 = vector.extract_strided_slice %166 {offsets = [0, 0], sizes = [2, 96], strides = [1, 1]} : vector<2x128xf32> to vector<2x96xf32>
    %168 = arith.negf %167 : vector<2x96xf32>
    %169 = math.exp %168 : vector<2x96xf32>
    %cst_46 = arith.constant 1.000000e+00 : f32
    %170 = vector.broadcast %cst_46 : f32 to vector<2x96xf32>
    %171 = arith.addf %170, %169 : vector<2x96xf32>
    %172 = arith.divf %170, %171 : vector<2x96xf32>
    %173 = vector.extract_strided_slice %172 {offsets = [0, 0], sizes = [2, 32], strides = [1, 1]} : vector<2x96xf32> to vector<2x32xf32>
    %174 = vector.extract_strided_slice %172 {offsets = [0, 32], sizes = [2, 32], strides = [1, 1]} : vector<2x96xf32> to vector<2x32xf32>
    %175 = vector.extract_strided_slice %172 {offsets = [0, 64], sizes = [2, 32], strides = [1, 1]} : vector<2x96xf32> to vector<2x32xf32>
    %176 = vector.extract_strided_slice %166 {offsets = [0, 96], sizes = [2, 32], strides = [1, 1]} : vector<2x128xf32> to vector<2x32xf32>
    %177 = math.tanh %176 : vector<2x32xf32>
    %178 = arith.mulf %174, %158 : vector<2x32xf32>
    %179 = arith.mulf %173, %177 : vector<2x32xf32>
    %180 = arith.addf %178, %179 : vector<2x32xf32>
    %181 = math.tanh %180 : vector<2x32xf32>
    %182 = arith.mulf %175, %181 : vector<2x32xf32>
    %c14 = arith.constant 14 : index
    %c0_47 = arith.constant 0 : index
    %183 = vector.load %arg13[%c14, %c0_47] : memref<16x32xf32, #tpu.memory_space<vmem>>, vector<2x32xf32>
    tpu.vector_store %arg13[%c14, %c0_47], %182 {strides = array<i32>} : memref<16x32xf32, #tpu.memory_space<vmem>>, vector<2x32xf32>,
    %c0_48 = arith.constant 0 : index
    %c0_49 = arith.constant 0 : index
    %184 = vector.load %arg13[%c0_48, %c0_49] : memref<16x32xf32, #tpu.memory_space<vmem>>, vector<16x32xf32>
    %185 = arith.truncf %184 : vector<16x32xf32> to vector<16x32xbf16>
    %c0_50 = arith.constant 0 : index
    %c0_51 = arith.constant 0 : index
    %186 = vector.load %arg4[%c0_50, %c0_51] : memref<32x128xbf16, #tpu.memory_space<vmem>>, vector<32x128xbf16>
    %cst_52 = arith.constant dense<0.000000e+00> : vector<16x128xf32>
    %187 = tpu.matmul %185, %186, %cst_52 {dimension_numbers = #tpu.dot_dimension_numbers<[1], [0], [0], [1], [0, 0, 1, 1], [], []>} : vector<16x32xbf16>, vector<32x128xbf16>, vector<16x128xf32> -> vector<16x128xf32>
    %c0_53 = arith.constant 0 : index
    %c0_54 = arith.constant 0 : index
    %188 = vector.load %arg6[%c0_53, %c0_54] : memref<1x128xf32, #tpu.memory_space<vmem>>, vector<1x128xf32>
    %189 = vector.broadcast %188 : vector<1x128xf32> to vector<16x128xf32>
    %190 = arith.addf %187, %189 : vector<16x128xf32>
    %cst_55 = arith.constant 0.000000e+00 : f32
    %191 = vector.broadcast %cst_55 : f32 to vector<2x32xf32>
    %cst_56 = arith.constant 0.000000e+00 : f32
    %192 = vector.broadcast %cst_56 : f32 to vector<2x32xf32>
    %193 = vector.extract_strided_slice %190 {offsets = [0, 0], sizes = [2, 128], strides = [1, 1]} : vector<16x128xf32> to vector<2x128xf32>
    %194 = arith.truncf %191 : vector<2x32xf32> to vector<2x32xbf16>
    %c0_57 = arith.constant 0 : index
    %c0_58 = arith.constant 0 : index
    %195 = vector.load %arg5[%c0_57, %c0_58] : memref<32x128xbf16, #tpu.memory_space<vmem>>, vector<32x128xbf16>
    %cst_59 = arith.constant dense<0.000000e+00> : vector<2x128xf32>
    %196 = tpu.matmul %194, %195, %cst_59 {dimension_numbers = #tpu.dot_dimension_numbers<[1], [0], [0], [1], [0, 0, 1, 1], [], []>} : vector<2x32xbf16>, vector<32x128xbf16>, vector<2x128xf32> -> vector<2x128xf32>
    %197 = arith.addf %193, %196 : vector<2x128xf32>
    %198 = vector.extract_strided_slice %197 {offsets = [0, 0], sizes = [2, 96], strides = [1, 1]} : vector<2x128xf32> to vector<2x96xf32>
    %199 = arith.negf %198 : vector<2x96xf32>
    %200 = math.exp %199 : vector<2x96xf32>
    %cst_60 = arith.constant 1.000000e+00 : f32
    %201 = vector.broadcast %cst_60 : f32 to vector<2x96xf32>
    %202 = arith.addf %201, %200 : vector<2x96xf32>
    %203 = arith.divf %201, %202 : vector<2x96xf32>
    %204 = vector.extract_strided_slice %203 {offsets = [0, 0], sizes = [2, 32], strides = [1, 1]} : vector<2x96xf32> to vector<2x32xf32>
    %205 = vector.extract_strided_slice %203 {offsets = [0, 32], sizes = [2, 32], strides = [1, 1]} : vector<2x96xf32> to vector<2x32xf32>
    %206 = vector.extract_strided_slice %203 {offsets = [0, 64], sizes = [2, 32], strides = [1, 1]} : vector<2x96xf32> to vector<2x32xf32>
    %207 = vector.extract_strided_slice %197 {offsets = [0, 96], sizes = [2, 32], strides = [1, 1]} : vector<2x128xf32> to vector<2x32xf32>
    %208 = math.tanh %207 : vector<2x32xf32>
    %209 = arith.mulf %205, %192 : vector<2x32xf32>
    %210 = arith.mulf %204, %208 : vector<2x32xf32>
    %211 = arith.addf %209, %210 : vector<2x32xf32>
    %212 = math.tanh %211 : vector<2x32xf32>
    %213 = arith.mulf %206, %212 : vector<2x32xf32>
    %214 = vector.extract_strided_slice %190 {offsets = [2, 0], sizes = [2, 128], strides = [1, 1]} : vector<16x128xf32> to vector<2x128xf32>
    %215 = arith.truncf %213 : vector<2x32xf32> to vector<2x32xbf16>
    %c0_61 = arith.constant 0 : index
    %c0_62 = arith.constant 0 : index
    %216 = vector.load %arg5[%c0_61, %c0_62] : memref<32x128xbf16, #tpu.memory_space<vmem>>, vector<32x128xbf16>
    %cst_63 = arith.constant dense<0.000000e+00> : vector<2x128xf32>
    %217 = tpu.matmul %215, %216, %cst_63 {dimension_numbers = #tpu.dot_dimension_numbers<[1], [0], [0], [1], [0, 0, 1, 1], [], []>} : vector<2x32xbf16>, vector<32x128xbf16>, vector<2x128xf32> -> vector<2x128xf32>
    %218 = arith.addf %214, %217 : vector<2x128xf32>
    %219 = vector.extract_strided_slice %218 {offsets = [0, 0], sizes = [2, 96], strides = [1, 1]} : vector<2x128xf32> to vector<2x96xf32>
    %220 = arith.negf %219 : vector<2x96xf32>
    %221 = math.exp %220 : vector<2x96xf32>
    %cst_64 = arith.constant 1.000000e+00 : f32
    %222 = vector.broadcast %cst_64 : f32 to vector<2x96xf32>
    %223 = arith.addf %222, %221 : vector<2x96xf32>
    %224 = arith.divf %222, %223 : vector<2x96xf32>
    %225 = vector.extract_strided_slice %224 {offsets = [0, 0], sizes = [2, 32], strides = [1, 1]} : vector<2x96xf32> to vector<2x32xf32>
    %226 = vector.extract_strided_slice %224 {offsets = [0, 32], sizes = [2, 32], strides = [1, 1]} : vector<2x96xf32> to vector<2x32xf32>
    %227 = vector.extract_strided_slice %224 {offsets = [0, 64], sizes = [2, 32], strides = [1, 1]} : vector<2x96xf32> to vector<2x32xf32>
    %228 = vector.extract_strided_slice %218 {offsets = [0, 96], sizes = [2, 32], strides = [1, 1]} : vector<2x128xf32> to vector<2x32xf32>
    %229 = math.tanh %228 : vector<2x32xf32>
    %230 = arith.mulf %226, %211 : vector<2x32xf32>
    %231 = arith.mulf %225, %229 : vector<2x32xf32>
    %232 = arith.addf %230, %231 : vector<2x32xf32>
    %233 = math.tanh %232 : vector<2x32xf32>
    %234 = arith.mulf %227, %233 : vector<2x32xf32>
    %235 = vector.extract_strided_slice %190 {offsets = [4, 0], sizes = [2, 128], strides = [1, 1]} : vector<16x128xf32> to vector<2x128xf32>
    %236 = arith.truncf %234 : vector<2x32xf32> to vector<2x32xbf16>
    %c0_65 = arith.constant 0 : index
    %c0_66 = arith.constant 0 : index
    %237 = vector.load %arg5[%c0_65, %c0_66] : memref<32x128xbf16, #tpu.memory_space<vmem>>, vector<32x128xbf16>
    %cst_67 = arith.constant dense<0.000000e+00> : vector<2x128xf32>
    %238 = tpu.matmul %236, %237, %cst_67 {dimension_numbers = #tpu.dot_dimension_numbers<[1], [0], [0], [1], [0, 0, 1, 1], [], []>} : vector<2x32xbf16>, vector<32x128xbf16>, vector<2x128xf32> -> vector<2x128xf32>
    %239 = arith.addf %235, %238 : vector<2x128xf32>
    %240 = vector.extract_strided_slice %239 {offsets = [0, 0], sizes = [2, 96], strides = [1, 1]} : vector<2x128xf32> to vector<2x96xf32>
    %241 = arith.negf %240 : vector<2x96xf32>
    %242 = math.exp %241 : vector<2x96xf32>
    %cst_68 = arith.constant 1.000000e+00 : f32
    %243 = vector.broadcast %cst_68 : f32 to vector<2x96xf32>
    %244 = arith.addf %243, %242 : vector<2x96xf32>
    %245 = arith.divf %243, %244 : vector<2x96xf32>
    %246 = vector.extract_strided_slice %245 {offsets = [0, 0], sizes = [2, 32], strides = [1, 1]} : vector<2x96xf32> to vector<2x32xf32>
    %247 = vector.extract_strided_slice %245 {offsets = [0, 32], sizes = [2, 32], strides = [1, 1]} : vector<2x96xf32> to vector<2x32xf32>
    %248 = vector.extract_strided_slice %245 {offsets = [0, 64], sizes = [2, 32], strides = [1, 1]} : vector<2x96xf32> to vector<2x32xf32>
    %249 = vector.extract_strided_slice %239 {offsets = [0, 96], sizes = [2, 32], strides = [1, 1]} : vector<2x128xf32> to vector<2x32xf32>
    %250 = math.tanh %249 : vector<2x32xf32>
    %251 = arith.mulf %247, %232 : vector<2x32xf32>
    %252 = arith.mulf %246, %250 : vector<2x32xf32>
    %253 = arith.addf %251, %252 : vector<2x32xf32>
    %254 = math.tanh %253 : vector<2x32xf32>
    %255 = arith.mulf %248, %254 : vector<2x32xf32>
    %256 = vector.extract_strided_slice %190 {offsets = [6, 0], sizes = [2, 128], strides = [1, 1]} : vector<16x128xf32> to vector<2x128xf32>
    %257 = arith.truncf %255 : vector<2x32xf32> to vector<2x32xbf16>
    %c0_69 = arith.constant 0 : index
    %c0_70 = arith.constant 0 : index
    %258 = vector.load %arg5[%c0_69, %c0_70] : memref<32x128xbf16, #tpu.memory_space<vmem>>, vector<32x128xbf16>
    %cst_71 = arith.constant dense<0.000000e+00> : vector<2x128xf32>
    %259 = tpu.matmul %257, %258, %cst_71 {dimension_numbers = #tpu.dot_dimension_numbers<[1], [0], [0], [1], [0, 0, 1, 1], [], []>} : vector<2x32xbf16>, vector<32x128xbf16>, vector<2x128xf32> -> vector<2x128xf32>
    %260 = arith.addf %256, %259 : vector<2x128xf32>
    %261 = vector.extract_strided_slice %260 {offsets = [0, 0], sizes = [2, 96], strides = [1, 1]} : vector<2x128xf32> to vector<2x96xf32>
    %262 = arith.negf %261 : vector<2x96xf32>
    %263 = math.exp %262 : vector<2x96xf32>
    %cst_72 = arith.constant 1.000000e+00 : f32
    %264 = vector.broadcast %cst_72 : f32 to vector<2x96xf32>
    %265 = arith.addf %264, %263 : vector<2x96xf32>
    %266 = arith.divf %264, %265 : vector<2x96xf32>
    %267 = vector.extract_strided_slice %266 {offsets = [0, 0], sizes = [2, 32], strides = [1, 1]} : vector<2x96xf32> to vector<2x32xf32>
    %268 = vector.extract_strided_slice %266 {offsets = [0, 32], sizes = [2, 32], strides = [1, 1]} : vector<2x96xf32> to vector<2x32xf32>
    %269 = vector.extract_strided_slice %266 {offsets = [0, 64], sizes = [2, 32], strides = [1, 1]} : vector<2x96xf32> to vector<2x32xf32>
    %270 = vector.extract_strided_slice %260 {offsets = [0, 96], sizes = [2, 32], strides = [1, 1]} : vector<2x128xf32> to vector<2x32xf32>
    %271 = math.tanh %270 : vector<2x32xf32>
    %272 = arith.mulf %268, %253 : vector<2x32xf32>
    %273 = arith.mulf %267, %271 : vector<2x32xf32>
    %274 = arith.addf %272, %273 : vector<2x32xf32>
    %275 = math.tanh %274 : vector<2x32xf32>
    %276 = arith.mulf %269, %275 : vector<2x32xf32>
    %277 = vector.extract_strided_slice %190 {offsets = [8, 0], sizes = [2, 128], strides = [1, 1]} : vector<16x128xf32> to vector<2x128xf32>
    %278 = arith.truncf %276 : vector<2x32xf32> to vector<2x32xbf16>
    %c0_73 = arith.constant 0 : index
    %c0_74 = arith.constant 0 : index
    %279 = vector.load %arg5[%c0_73, %c0_74] : memref<32x128xbf16, #tpu.memory_space<vmem>>, vector<32x128xbf16>
    %cst_75 = arith.constant dense<0.000000e+00> : vector<2x128xf32>
    %280 = tpu.matmul %278, %279, %cst_75 {dimension_numbers = #tpu.dot_dimension_numbers<[1], [0], [0], [1], [0, 0, 1, 1], [], []>} : vector<2x32xbf16>, vector<32x128xbf16>, vector<2x128xf32> -> vector<2x128xf32>
    %281 = arith.addf %277, %280 : vector<2x128xf32>
    %282 = vector.extract_strided_slice %281 {offsets = [0, 0], sizes = [2, 96], strides = [1, 1]} : vector<2x128xf32> to vector<2x96xf32>
    %283 = arith.negf %282 : vector<2x96xf32>
    %284 = math.exp %283 : vector<2x96xf32>
    %cst_76 = arith.constant 1.000000e+00 : f32
    %285 = vector.broadcast %cst_76 : f32 to vector<2x96xf32>
    %286 = arith.addf %285, %284 : vector<2x96xf32>
    %287 = arith.divf %285, %286 : vector<2x96xf32>
    %288 = vector.extract_strided_slice %287 {offsets = [0, 0], sizes = [2, 32], strides = [1, 1]} : vector<2x96xf32> to vector<2x32xf32>
    %289 = vector.extract_strided_slice %287 {offsets = [0, 32], sizes = [2, 32], strides = [1, 1]} : vector<2x96xf32> to vector<2x32xf32>
    %290 = vector.extract_strided_slice %287 {offsets = [0, 64], sizes = [2, 32], strides = [1, 1]} : vector<2x96xf32> to vector<2x32xf32>
    %291 = vector.extract_strided_slice %281 {offsets = [0, 96], sizes = [2, 32], strides = [1, 1]} : vector<2x128xf32> to vector<2x32xf32>
    %292 = math.tanh %291 : vector<2x32xf32>
    %293 = arith.mulf %289, %274 : vector<2x32xf32>
    %294 = arith.mulf %288, %292 : vector<2x32xf32>
    %295 = arith.addf %293, %294 : vector<2x32xf32>
    %296 = math.tanh %295 : vector<2x32xf32>
    %297 = arith.mulf %290, %296 : vector<2x32xf32>
    %298 = vector.extract_strided_slice %190 {offsets = [10, 0], sizes = [2, 128], strides = [1, 1]} : vector<16x128xf32> to vector<2x128xf32>
    %299 = arith.truncf %297 : vector<2x32xf32> to vector<2x32xbf16>
    %c0_77 = arith.constant 0 : index
    %c0_78 = arith.constant 0 : index
    %300 = vector.load %arg5[%c0_77, %c0_78] : memref<32x128xbf16, #tpu.memory_space<vmem>>, vector<32x128xbf16>
    %cst_79 = arith.constant dense<0.000000e+00> : vector<2x128xf32>
    %301 = tpu.matmul %299, %300, %cst_79 {dimension_numbers = #tpu.dot_dimension_numbers<[1], [0], [0], [1], [0, 0, 1, 1], [], []>} : vector<2x32xbf16>, vector<32x128xbf16>, vector<2x128xf32> -> vector<2x128xf32>
    %302 = arith.addf %298, %301 : vector<2x128xf32>
    %303 = vector.extract_strided_slice %302 {offsets = [0, 0], sizes = [2, 96], strides = [1, 1]} : vector<2x128xf32> to vector<2x96xf32>
    %304 = arith.negf %303 : vector<2x96xf32>
    %305 = math.exp %304 : vector<2x96xf32>
    %cst_80 = arith.constant 1.000000e+00 : f32
    %306 = vector.broadcast %cst_80 : f32 to vector<2x96xf32>
    %307 = arith.addf %306, %305 : vector<2x96xf32>
    %308 = arith.divf %306, %307 : vector<2x96xf32>
    %309 = vector.extract_strided_slice %308 {offsets = [0, 0], sizes = [2, 32], strides = [1, 1]} : vector<2x96xf32> to vector<2x32xf32>
    %310 = vector.extract_strided_slice %308 {offsets = [0, 32], sizes = [2, 32], strides = [1, 1]} : vector<2x96xf32> to vector<2x32xf32>
    %311 = vector.extract_strided_slice %308 {offsets = [0, 64], sizes = [2, 32], strides = [1, 1]} : vector<2x96xf32> to vector<2x32xf32>
    %312 = vector.extract_strided_slice %302 {offsets = [0, 96], sizes = [2, 32], strides = [1, 1]} : vector<2x128xf32> to vector<2x32xf32>
    %313 = math.tanh %312 : vector<2x32xf32>
    %314 = arith.mulf %310, %295 : vector<2x32xf32>
    %315 = arith.mulf %309, %313 : vector<2x32xf32>
    %316 = arith.addf %314, %315 : vector<2x32xf32>
    %317 = math.tanh %316 : vector<2x32xf32>
    %318 = arith.mulf %311, %317 : vector<2x32xf32>
    %319 = vector.extract_strided_slice %190 {offsets = [12, 0], sizes = [2, 128], strides = [1, 1]} : vector<16x128xf32> to vector<2x128xf32>
    %320 = arith.truncf %318 : vector<2x32xf32> to vector<2x32xbf16>
    %c0_81 = arith.constant 0 : index
    %c0_82 = arith.constant 0 : index
    %321 = vector.load %arg5[%c0_81, %c0_82] : memref<32x128xbf16, #tpu.memory_space<vmem>>, vector<32x128xbf16>
    %cst_83 = arith.constant dense<0.000000e+00> : vector<2x128xf32>
    %322 = tpu.matmul %320, %321, %cst_83 {dimension_numbers = #tpu.dot_dimension_numbers<[1], [0], [0], [1], [0, 0, 1, 1], [], []>} : vector<2x32xbf16>, vector<32x128xbf16>, vector<2x128xf32> -> vector<2x128xf32>
    %323 = arith.addf %319, %322 : vector<2x128xf32>
    %324 = vector.extract_strided_slice %323 {offsets = [0, 0], sizes = [2, 96], strides = [1, 1]} : vector<2x128xf32> to vector<2x96xf32>
    %325 = arith.negf %324 : vector<2x96xf32>
    %326 = math.exp %325 : vector<2x96xf32>
    %cst_84 = arith.constant 1.000000e+00 : f32
    %327 = vector.broadcast %cst_84 : f32 to vector<2x96xf32>
    %328 = arith.addf %327, %326 : vector<2x96xf32>
    %329 = arith.divf %327, %328 : vector<2x96xf32>
    %330 = vector.extract_strided_slice %329 {offsets = [0, 0], sizes = [2, 32], strides = [1, 1]} : vector<2x96xf32> to vector<2x32xf32>
    %331 = vector.extract_strided_slice %329 {offsets = [0, 32], sizes = [2, 32], strides = [1, 1]} : vector<2x96xf32> to vector<2x32xf32>
    %332 = vector.extract_strided_slice %329 {offsets = [0, 64], sizes = [2, 32], strides = [1, 1]} : vector<2x96xf32> to vector<2x32xf32>
    %333 = vector.extract_strided_slice %323 {offsets = [0, 96], sizes = [2, 32], strides = [1, 1]} : vector<2x128xf32> to vector<2x32xf32>
    %334 = math.tanh %333 : vector<2x32xf32>
    %335 = arith.mulf %331, %316 : vector<2x32xf32>
    %336 = arith.mulf %330, %334 : vector<2x32xf32>
    %337 = arith.addf %335, %336 : vector<2x32xf32>
    %338 = math.tanh %337 : vector<2x32xf32>
    %339 = arith.mulf %332, %338 : vector<2x32xf32>
    %340 = vector.extract_strided_slice %190 {offsets = [14, 0], sizes = [2, 128], strides = [1, 1]} : vector<16x128xf32> to vector<2x128xf32>
    %341 = arith.truncf %339 : vector<2x32xf32> to vector<2x32xbf16>
    %c0_85 = arith.constant 0 : index
    %c0_86 = arith.constant 0 : index
    %342 = vector.load %arg5[%c0_85, %c0_86] : memref<32x128xbf16, #tpu.memory_space<vmem>>, vector<32x128xbf16>
    %cst_87 = arith.constant dense<0.000000e+00> : vector<2x128xf32>
    %343 = tpu.matmul %341, %342, %cst_87 {dimension_numbers = #tpu.dot_dimension_numbers<[1], [0], [0], [1], [0, 0, 1, 1], [], []>} : vector<2x32xbf16>, vector<32x128xbf16>, vector<2x128xf32> -> vector<2x128xf32>
    %344 = arith.addf %340, %343 : vector<2x128xf32>
    %345 = vector.extract_strided_slice %344 {offsets = [0, 0], sizes = [2, 96], strides = [1, 1]} : vector<2x128xf32> to vector<2x96xf32>
    %346 = arith.negf %345 : vector<2x96xf32>
    %347 = math.exp %346 : vector<2x96xf32>
    %cst_88 = arith.constant 1.000000e+00 : f32
    %348 = vector.broadcast %cst_88 : f32 to vector<2x96xf32>
    %349 = arith.addf %348, %347 : vector<2x96xf32>
    %350 = arith.divf %348, %349 : vector<2x96xf32>
    %351 = vector.extract_strided_slice %350 {offsets = [0, 0], sizes = [2, 32], strides = [1, 1]} : vector<2x96xf32> to vector<2x32xf32>
    %352 = vector.extract_strided_slice %350 {offsets = [0, 32], sizes = [2, 32], strides = [1, 1]} : vector<2x96xf32> to vector<2x32xf32>
    %353 = vector.extract_strided_slice %350 {offsets = [0, 64], sizes = [2, 32], strides = [1, 1]} : vector<2x96xf32> to vector<2x32xf32>
    %354 = vector.extract_strided_slice %344 {offsets = [0, 96], sizes = [2, 32], strides = [1, 1]} : vector<2x128xf32> to vector<2x32xf32>
    %355 = math.tanh %354 : vector<2x32xf32>
    %356 = arith.mulf %352, %337 : vector<2x32xf32>
    %357 = arith.mulf %351, %355 : vector<2x32xf32>
    %358 = arith.addf %356, %357 : vector<2x32xf32>
    %359 = math.tanh %358 : vector<2x32xf32>
    %360 = arith.mulf %353, %359 : vector<2x32xf32>
    %361 = arith.truncf %360 : vector<2x32xf32> to vector<2x32xbf16>
    %c0_89 = arith.constant 0 : index
    %c0_90 = arith.constant 0 : index
    %362 = vector.load %arg7[%c0_89, %c0_90] : memref<32x32xbf16, #tpu.memory_space<vmem>>, vector<32x32xbf16>
    %cst_91 = arith.constant dense<0.000000e+00> : vector<2x32xf32>
    %363 = tpu.matmul %361, %362, %cst_91 {dimension_numbers = #tpu.dot_dimension_numbers<[1], [0], [0], [1], [0, 0, 1, 1], [], []>} : vector<2x32xbf16>, vector<32x32xbf16>, vector<2x32xf32> -> vector<2x32xf32>
    %c0_92 = arith.constant 0 : index
    %c0_93 = arith.constant 0 : index
    %364 = vector.load %arg8[%c0_92, %c0_93] : memref<1x32xf32, #tpu.memory_space<vmem>>, vector<1x32xf32>
    %365 = vector.broadcast %364 : vector<1x32xf32> to vector<2x32xf32>
    %366 = arith.addf %363, %365 : vector<2x32xf32>
    %cst_94 = arith.constant 0.000000e+00 : f32
    %367 = vector.broadcast %cst_94 : f32 to vector<2x32xf32>
    %368 = arith.maximumf %366, %367 : vector<2x32xf32>
    %c0_95 = arith.constant 0 : index
    %c0_96 = arith.constant 0 : index
    %369 = vector.load %arg11[%c0_95, %c0_96] : memref<2x32xf32, #tpu.memory_space<vmem>>, vector<2x32xf32>
    tpu.vector_store %arg11[%c0_95, %c0_96], %368 {strides = array<i32>} : memref<2x32xf32, #tpu.memory_space<vmem>>, vector<2x32xf32>,
    %c0_97 = arith.constant 0 : index
    %c0_98 = arith.constant 0 : index
    %370 = vector.load %arg9[%c0_97, %c0_98] : memref<1x32xf32, #tpu.memory_space<vmem>>, vector<1x32xf32>
    %371 = vector.broadcast %370 : vector<1x32xf32> to vector<2x32xf32>
    %372 = arith.mulf %368, %371 : vector<2x32xf32>
    %cst_99 = arith.constant dense<0.000000e+00> : vector<2xf32>
    %373 = vector.multi_reduction <add>, %372, %cst_99 [1] : vector<2x32xf32> to vector<2xf32>
    %374 = vector.shape_cast %373 : vector<2xf32> to vector<2x1xf32>
    %c0_100 = arith.constant 0 : index
    %c0_101 = arith.constant 0 : index
    %375 = vector.load %arg10[%c0_100, %c0_101] : memref<1x1xf32, #tpu.memory_space<vmem>>, vector<1x1xf32>
    %376 = vector.broadcast %375 : vector<1x1xf32> to vector<2x1xf32>
    %377 = arith.addf %374, %376 : vector<2x1xf32>
    %c0_102 = arith.constant 0 : index
    %c0_103 = arith.constant 0 : index
    %378 = vector.load %arg12[%c0_102, %c0_103] : memref<2x1xf32, #tpu.memory_space<vmem>>, vector<2x1xf32>
    tpu.vector_store %arg12[%c0_102, %c0_103], %377 {strides = array<i32>} : memref<2x1xf32, #tpu.memory_space<vmem>>, vector<2x1xf32>,
    return
  }
}

</mosaic_0001>

<llo_original>
// kernel: ef_lstm_forward.1
$region0: #{ef_lstm_forward.1}
  #allocation0 [shape = 'u32[]', space=smem, size = 0x4, offset = 0x4, fixed_abs, tag = 'smem constant byte address 0x4 - core index']
  #allocation1 [shape = 'u32[144,128]{1,0:T(1,128)}', space=vmem, size = 0x12000, scoped, tag = 'internal scratch']
  #allocation2 [shape = 'f32[16,32]{1,0:T(8,128)}', space=vmem, size = 0x2000, scoped, tag = 'scratch operand']
  #allocation3 [shape = 'f32[1,1]{1,0:T(1,128)S(1)}', space=vmem, size = 0x200, scoped, tag = 'scoped memory for ef_lstm_forward.1']
  %s0 = inlined_call_operand.vmem [shape: bf16[16,32], index: 0, kind: input, shape index: {}]
  %s1 = inlined_call_operand.vmem [shape: bf16[32,128], index: 1, kind: input, shape index: {}]
  %s2 = inlined_call_operand.vmem [shape: bf16[32,128], index: 2, kind: input, shape index: {}]
  %s3 = inlined_call_operand.vmem [shape: f32[1,128], index: 3, kind: input, shape index: {}]
  %s4 = inlined_call_operand.vmem [shape: bf16[32,128], index: 4, kind: input, shape index: {}]
  %s5 = inlined_call_operand.vmem [shape: bf16[32,128], index: 5, kind: input, shape index: {}]
  %s6 = inlined_call_operand.vmem [shape: f32[1,128], index: 6, kind: input, shape index: {}]
  %s7 = inlined_call_operand.vmem [shape: bf16[32,32], index: 7, kind: input, shape index: {}]
  %s8 = inlined_call_operand.vmem [shape: f32[1,32], index: 8, kind: input, shape index: {}]
  %s9 = inlined_call_operand.vmem [shape: f32[1,32], index: 9, kind: input, shape index: {}]
  %s10 = inlined_call_operand.<no memory space> [shape: f32[1,1], index: 10, kind: input, shape index: {}]
  %s11 = inlined_call_operand.hbm [shape: f32[2,32], index: 11, kind: output, shape index: {0}]
  %s12 = inlined_call_operand.vmem [shape: f32[2,1], index: 12, kind: output, shape index: {1}]
  %13 = xla_tuple %s11, %s12
  %s14 = sld [smem:[#allocation0]]
  $region62: #{ef_lstm_forward.1} parent=0
    _
  %s16 = ssub.s32 1, %s14
  %s17 = scalar_select 0, %s16, %s14
  %v18 = vstv %s10
  %19 = vst [vmem:[#allocation3] sm:$0x1] %v18
  $region1: #{ef_lstm_forward.1} parent=0
    #allocation4 [shape = 'u8[1024]{0}', space=vmem, size = 0x400, scoped, tag = 'output window, operand 0, single buffered']
    #allocation5 [shape = 's32[1]{0}', space=sflag, size = 0x4, scoped, tag = 'scoped memory for ef_lstm_forward.1']
    %20 = vsyncpa [#allocation5], 0
    // Predicated region
    $region2: #{ef_lstm_forward.1} parent=1 // pred_check
      _
    $region3: #{ef_lstm_forward.1} parent=1 // pred_check_branch
      %22 = sbr.rel (0) target = $region5
    $region4: #{ef_lstm_forward.1} parent=1 // pred_region
      _
    $region5: #{ef_lstm_forward.1} parent=1 // pred_fallthru
      _
    // Predicated region
    $region6: #{ef_lstm_forward.1} parent=1 // pred_check
      _
    $region7: #{ef_lstm_forward.1} parent=1 // pred_check_branch
      %24 = sbr.rel (0) target = $region9
    $region8: #{ef_lstm_forward.1} parent=1 // pred_region
      _
    $region9: #{ef_lstm_forward.1} parent=1 // pred_fallthru
      _
    // Predicated region
    $region10: #{ef_lstm_forward.1} parent=1 // pred_check
      _
    $region11: #{ef_lstm_forward.1} parent=1 // pred_check_branch
      %26 = sbr.rel (0) target = $region13
    $region12: #{ef_lstm_forward.1} parent=1 // pred_region
      _
    $region13: #{ef_lstm_forward.1} parent=1 // pred_fallthru
      _
    // Predicated region
    $region14: #{ef_lstm_forward.1} parent=1 // pred_check
      _
    $region15: #{ef_lstm_forward.1} parent=1 // pred_check_branch
      %28 = sbr.rel (0) target = $region17
    $region16: #{ef_lstm_forward.1} parent=1 // pred_region
      _
    $region17: #{ef_lstm_forward.1} parent=1 // pred_fallthru
      _
    // Predicated region
    $region18: #{ef_lstm_forward.1} parent=1 // pred_check
      _
    $region19: #{ef_lstm_forward.1} parent=1 // pred_check_branch
      %30 = sbr.rel (0) target = $region21
    $region20: #{ef_lstm_forward.1} parent=1 // pred_region
      _
    $region21: #{ef_lstm_forward.1} parent=1 // pred_fallthru
      _
    // Predicated region
    $region22: #{ef_lstm_forward.1} parent=1 // pred_check
      _
    $region23: #{ef_lstm_forward.1} parent=1 // pred_check_branch
      %32 = sbr.rel (0) target = $region25
    $region24: #{ef_lstm_forward.1} parent=1 // pred_region
      _
    $region25: #{ef_lstm_forward.1} parent=1 // pred_fallthru
      _
    // Predicated region
    $region26: #{ef_lstm_forward.1} parent=1 // pred_check
      _
    $region27: #{ef_lstm_forward.1} parent=1 // pred_check_branch
      %34 = sbr.rel (0) target = $region29
    $region28: #{ef_lstm_forward.1} parent=1 // pred_region
      _
    $region29: #{ef_lstm_forward.1} parent=1 // pred_fallthru
      _
    // Predicated region
    $region30: #{ef_lstm_forward.1} parent=1 // pred_check
      _
    $region31: #{ef_lstm_forward.1} parent=1 // pred_check_branch
      %36 = sbr.rel (0) target = $region33
    $region32: #{ef_lstm_forward.1} parent=1 // pred_region
      _
    $region33: #{ef_lstm_forward.1} parent=1 // pred_fallthru
      _
    // Predicated region
    $region34: #{ef_lstm_forward.1} parent=1 // pred_check
      _
    $region35: #{ef_lstm_forward.1} parent=1 // pred_check_branch
      %38 = sbr.rel (0) target = $region37
    $region36: #{ef_lstm_forward.1} parent=1 // pred_region
      _
    $region37: #{ef_lstm_forward.1} parent=1 // pred_fallthru
      _
    // Predicated region
    $region38: #{ef_lstm_forward.1} parent=1 // pred_check
      _
    $region39: #{ef_lstm_forward.1} parent=1 // pred_check_branch
      %40 = sbr.rel (0) target = $region41
    $region40: #{ef_lstm_forward.1} parent=1 // pred_region
      _
    $region41: #{ef_lstm_forward.1} parent=1 // pred_fallthru
      _
    // Predicated region
    $region42: #{ef_lstm_forward.1} parent=1 // pred_check
      _
    $region43: #{ef_lstm_forward.1} parent=1 // pred_check_branch
      %42 = sbr.rel (0) target = $region45
    $region44: #{ef_lstm_forward.1} parent=1 // pred_region
      _
    $region45: #{ef_lstm_forward.1} parent=1 // pred_fallthru
      _
    %v44 = vld [vmem:[%s0] sm:$0xf]
    %v45 = vld [vmem:[%s0 + $0x4] sm:$0xf]
    %v46 = vld [vmem:[%s1] sm:$0xf]
    %v47 = vld [vmem:[%s1 + $0x4] sm:$0xf]
    %v48 = vld [vmem:[%s1 + $0x8] sm:$0xf]
    %v49 = vld [vmem:[%s1 + $0xc] sm:$0xf]
    %v50 = vld [vmem:[%s3] sm:$0x1]
    %v52 = vlaneseq
    %v53 = vshrl.u32 %v52, 7
    %v54 = vsub.s32 0, %v53
    %v55 = vrot.slane %v50, %v54
    %v59 = vunpack.c.l.b16 %v44
    %v60 = vunpack.c.l.b16 %v45
    %v61 = vpack.c.b16 %v60, %v59
    %v66 = vunpack.c.l.b16 %v46
    %v67 = vunpack.c.l.b16 %v47
    %v68 = vunpack.c.l.b16 %v48
    %v69 = vunpack.c.l.b16 %v49
    %v70 = vpack.c.b16 %v67, %v66
    %v71 = vpack.c.b16 %v69, %v68
    %vm74 = vcmask 261120
    %v76 = vsel %vm74, %v61, 0
    %78 = vmatprep.subr.bf16.mxu0 0
    %79 = vmatpush1.bf16.msra.mxu0 %v70
    %80 = vmatprep.subr.bf16.mxu0 0
    %81 = vmatpush1.bf16.msra.mxu0 %v71
    %82 = vmatprep.subr.bf16.mxu0 0
    %83 = vmatpush1.bf16.msra.mxu0 0
    %84 = vmatprep.subr.bf16.mxu0 0
    %85 = vmatpush1.bf16.msra.mxu0 0
    %86 = vmatprep.subr.bf16.mxu0 0
    %87 = vmatpush1.bf16.msra.mxu0 0
    %88 = vmatprep.subr.bf16.mxu0 0
    %89 = vmatpush1.bf16.msra.mxu0 0
    %90 = vmatprep.subr.bf16.mxu0 0
    %91 = vmatpush1.bf16.msra.mxu0 0
    %92 = vmatprep.subr.bf16.mxu0 0
    %93 = vmatpush1.bf16.msra.mxu0 0
    %94 = vmatprep.subr.bf16.mxu0 0
    %95 = vmatpush1.bf16.msra.mxu0 0
    %96 = vmatprep.subr.bf16.mxu0 0
    %97 = vmatpush1.bf16.msra.mxu0 0
    %98 = vmatprep.subr.bf16.mxu0 0
    %99 = vmatpush1.bf16.msra.mxu0 0
    %100 = vmatprep.subr.bf16.mxu0 0
    %101 = vmatpush1.bf16.msra.mxu0 0
    %102 = vmatprep.subr.bf16.mxu0 0
    %103 = vmatpush1.bf16.msra.mxu0 0
    %104 = vmatprep.subr.bf16.mxu0 0
    %105 = vmatpush1.bf16.msra.mxu0 0
    %106 = vmatprep.subr.bf16.mxu0 0
    %107 = vmatpush1.bf16.msra.mxu0 0
    %108 = vmatprep.subr.bf16.mxu0 0
    %109 = vmatpush1.bf16.msra.mxu0 0
    %110 = vmatprep.mubr.bf16.mxu0 0
    %111 = vmatmul.mubr.bf16.gmra.mrb[0].mxu0 %v76
    %v112 = vpop.f32.mrb[0].mxu0
    %v113 = vadd.f32 %v55, %v112
    %v114 = vpop.f32.mrb[0].mxu0
    %v115 = vpop.f32.mrb[0].mxu0
    %v116 = vadd.f32 %v55, %v115
    %v117 = vpop.f32.mrb[0].mxu0
    %118 = vdwg.mxu0
    %v119 = vld [vmem:[%s2] sm:$0xf]
    %v120 = vld [vmem:[%s2 + $0x4] sm:$0xf]
    %v121 = vld [vmem:[%s2 + $0x8] sm:$0xf]
    %v122 = vld [vmem:[%s2 + $0xc] sm:$0xf]
    %v127 = vunpack.c.l.b16 %v119
    %v128 = vunpack.c.l.b16 %v120
    %v129 = vunpack.c.l.b16 %v121
    %v130 = vunpack.c.l.b16 %v122
    %v131 = vpack.c.b16 %v128, %v127
    %v132 = vpack.c.b16 %v130, %v129
    %v136 = vsel %vm74, 0, 0
    %138 = vmatprep.subr.bf16.mxu0 0
    %139 = vmatpush1.bf16.msra.mxu0 %v131
    %140 = vmatprep.subr.bf16.mxu0 0
    %141 = vmatpush1.bf16.msra.mxu0 %v132
    %142 = vmatprep.subr.bf16.mxu0 0
    %143 = vmatpush1.bf16.msra.mxu0 0
    %144 = vmatprep.subr.bf16.mxu0 0
    %145 = vmatpush1.bf16.msra.mxu0 0
    %146 = vmatprep.subr.bf16.mxu0 0
    %147 = vmatpush1.bf16.msra.mxu0 0
    %148 = vmatprep.subr.bf16.mxu0 0
    %149 = vmatpush1.bf16.msra.mxu0 0
    %150 = vmatprep.subr.bf16.mxu0 0
    %151 = vmatpush1.bf16.msra.mxu0 0
    %152 = vmatprep.subr.bf16.mxu0 0
    %153 = vmatpush1.bf16.msra.mxu0 0
    %154 = vmatprep.subr.bf16.mxu0 0
    %155 = vmatpush1.bf16.msra.mxu0 0
    %156 = vmatprep.subr.bf16.mxu0 0
    %157 = vmatpush1.bf16.msra.mxu0 0
    %158 = vmatprep.subr.bf16.mxu0 0
    %159 = vmatpush1.bf16.msra.mxu0 0
    %160 = vmatprep.subr.bf16.mxu0 0
    %161 = vmatpush1.bf16.msra.mxu0 0
    %162 = vmatprep.subr.bf16.mxu0 0
    %163 = vmatpush1.bf16.msra.mxu0 0
    %164 = vmatprep.subr.bf16.mxu0 0
    %165 = vmatpush1.bf16.msra.mxu0 0
    %166 = vmatprep.subr.bf16.mxu0 0
    %167 = vmatpush1.bf16.msra.mxu0 0
    %168 = vmatprep.subr.bf16.mxu0 0
    %169 = vmatpush1.bf16.msra.mxu0 0
    %170 = vmatprep.mubr.bf16.mxu0 0
    %171 = vmatmul.mubr.bf16.gmra.mrb[0].mxu0 %v136
    %v172 = vpop.f32.mrb[0].mxu0
    %v173 = vadd.f32 0.0, %v172
    %v174 = vpop.f32.mrb[0].mxu0
    %v175 = vpop.f32.mrb[0].mxu0
    %v176 = vpop.f32.mrb[0].mxu0
    %177 = vdwg.mxu0
    %v178 = vadd.f32 %v113, %v173
    %v179 = vxor.u32 %v178, 2147483648
    %v180 = vmul.f32 %v179, 1.442695
    %v181 = vpow.pop %v180
    %v182 = vadd.f32 %v181, 1.0
    %v183 = vrcp.pop %v182
    %v184 = vmul.f32 1.0, %v183
    %v185 = vtanh.pop %v178
    %v186 = vmul.f32 %v184, 0.0
    %188 = vrot.lane.b32.xlu0 %v185, 32
    %v189 = vpop.permute.xlu0 %188
    %v191 = vmul.f32 %v184, %v189
    %193 = vrot.lane.b32.xlu0 %v191, 32
    %v194 = vpop.permute.xlu0 %193
    %v196 = vadd.f32 %v186, %v194
    %v197 = vtanh.pop %v196
    %199 = vrot.lane.b32.xlu0 %v197, 32
    %v200 = vpop.permute.xlu0 %199
    %v202 = vmul.f32 %v184, %v200
    %204 = vrot.lane.b32.xlu0 %v202, 64
    %v205 = vpop.permute.xlu0 %204
    %vm207 = vcmask 254976
    %208 = vst.msk [vmem:[#allocation2] sm:$0x3] %vm207, %v205
    %v209 = vpack.c.bf16 %v202, %v202
    %v210 = vld [vmem:[%s2] sm:$0xf]
    %v211 = vld [vmem:[%s2 + $0x4] sm:$0xf]
    %v212 = vld [vmem:[%s2 + $0x8] sm:$0xf]
    %v213 = vld [vmem:[%s2 + $0xc] sm:$0xf]
    %215 = vrot.lane.b32.xlu0 %v209, 64
    %v216 = vpop.permute.xlu0 %215
    %v221 = vunpack.c.l.b16 %v210
    %v222 = vunpack.c.l.b16 %v211
    %v223 = vunpack.c.l.b16 %v212
    %v224 = vunpack.c.l.b16 %v213
    %v225 = vpack.c.b16 %v222, %v221
    %v226 = vpack.c.b16 %v224, %v223
    %v230 = vsel %vm74, %v216, 0
    %232 = vmatprep.subr.bf16.mxu0 0
    %233 = vmatpush1.bf16.msra.mxu0 %v225
    %234 = vmatprep.subr.bf16.mxu0 0
    %235 = vmatpush1.bf16.msra.mxu0 %v226
    %236 = vmatprep.subr.bf16.mxu0 0
    %237 = vmatpush1.bf16.msra.mxu0 0
    %238 = vmatprep.subr.bf16.mxu0 0
    %239 = vmatpush1.bf16.msra.mxu0 0
    %240 = vmatprep.subr.bf16.mxu0 0
    %241 = vmatpush1.bf16.msra.mxu0 0
    %242 = vmatprep.subr.bf16.mxu0 0
    %243 = vmatpush1.bf16.msra.mxu0 0
    %244 = vmatprep.subr.bf16.mxu0 0
    %245 = vmatpush1.bf16.msra.mxu0 0
    %246 = vmatprep.subr.bf16.mxu0 0
    %247 = vmatpush1.bf16.msra.mxu0 0
    %248 = vmatprep.subr.bf16.mxu0 0
    %249 = vmatpush1.bf16.msra.mxu0 0
    %250 = vmatprep.subr.bf16.mxu0 0
    %251 = vmatpush1.bf16.msra.mxu0 0
    %252 = vmatprep.subr.bf16.mxu0 0
    %253 = vmatpush1.bf16.msra.mxu0 0
    %254 = vmatprep.subr.bf16.mxu0 0
    %255 = vmatpush1.bf16.msra.mxu0 0
    %256 = vmatprep.subr.bf16.mxu0 0
    %257 = vmatpush1.bf16.msra.mxu0 0
    %258 = vmatprep.subr.bf16.mxu0 0
    %259 = vmatpush1.bf16.msra.mxu0 0
    %260 = vmatprep.subr.bf16.mxu0 0
    %261 = vmatpush1.bf16.msra.mxu0 0
    %262 = vmatprep.subr.bf16.mxu0 0
    %263 = vmatpush1.bf16.msra.mxu0 0
    %264 = vmatprep.mubr.bf16.mxu0 0
    %265 = vmatmul.mubr.bf16.gmra.mrb[0].mxu0 %v230
    %v266 = vpop.f32.mrb[0].mxu0
    %v267 = vadd.f32 0.0, %v266
    %v268 = vpop.f32.mrb[0].mxu0
    %v269 = vpop.f32.mrb[0].mxu0
    %v270 = vpop.f32.mrb[0].mxu0
    %271 = vdwg.mxu0
    %v273 = vrot.slane %v267, 6
    %v275 = vadd.f32 %v113, %v273
    %v276 = vxor.u32 %v275, 2147483648
    %v277 = vmul.f32 %v276, 1.442695
    %v278 = vpow.pop %v277
    %v279 = vadd.f32 %v278, 1.0
    %v280 = vrcp.pop %v279
    %v281 = vmul.f32 1.0, %v280
    %v282 = vtanh.pop %v275
    %v284 = vrot.slane %v196, 6
    %v286 = vmul.f32 %v281, %v284
    %288 = vrot.lane.b32.xlu0 %v282, 32
    %v289 = vpop.permute.xlu0 %288
    %v291 = vmul.f32 %v281, %v289
    %293 = vrot.lane.b32.xlu0 %v291, 32
    %v294 = vpop.permute.xlu0 %293
    %v296 = vadd.f32 %v286, %v294
    %v297 = vtanh.pop %v296
    %299 = vrot.lane.b32.xlu0 %v297, 32
    %v300 = vpop.permute.xlu0 %299
    %v302 = vmul.f32 %v281, %v300
    %304 = vrot.lane.b32.xlu0 %v302, 64
    %v305 = vpop.permute.xlu0 %304
    %vm307 = vcmask 257026
    %308 = vst.msk [vmem:[#allocation2] sm:$0xc] %vm307, %v305
    %v309 = vpack.c.bf16 %v302, %v302
    %v310 = vld [vmem:[%s2] sm:$0xf]
    %v311 = vld [vmem:[%s2 + $0x4] sm:$0xf]
    %v312 = vld [vmem:[%s2 + $0x8] sm:$0xf]
    %v313 = vld [vmem:[%s2 + $0xc] sm:$0xf]
    %v315 = vrot.slane %v309, 1
    %316 = vrot.lane.b32.xlu0 %v315, 64
    %v317 = vpop.permute.xlu0 %316
    %v322 = vunpack.c.l.b16 %v310
    %v323 = vunpack.c.l.b16 %v311
    %v324 = vunpack.c.l.b16 %v312
    %v325 = vunpack.c.l.b16 %v313
    %v326 = vpack.c.b16 %v323, %v322
    %v327 = vpack.c.b16 %v325, %v324
    %v331 = vsel %vm74, %v317, 0
    %333 = vmatprep.subr.bf16.mxu0 0
    %334 = vmatpush1.bf16.msra.mxu0 %v326
    %335 = vmatprep.subr.bf16.mxu0 0
    %336 = vmatpush1.bf16.msra.mxu0 %v327
    %337 = vmatprep.subr.bf16.mxu0 0
    %338 = vmatpush1.bf16.msra.mxu0 0
    %339 = vmatprep.subr.bf16.mxu0 0
    %340 = vmatpush1.bf16.msra.mxu0 0
    %341 = vmatprep.subr.bf16.mxu0 0
    %342 = vmatpush1.bf16.msra.mxu0 0
    %343 = vmatprep.subr.bf16.mxu0 0
    %344 = vmatpush1.bf16.msra.mxu0 0
    %345 = vmatprep.subr.bf16.mxu0 0
    %346 = vmatpush1.bf16.msra.mxu0 0
    %347 = vmatprep.subr.bf16.mxu0 0
    %348 = vmatpush1.bf16.msra.mxu0 0
    %349 = vmatprep.subr.bf16.mxu0 0
    %350 = vmatpush1.bf16.msra.mxu0 0
    %351 = vmatprep.subr.bf16.mxu0 0
    %352 = vmatpush1.bf16.msra.mxu0 0
    %353 = vmatprep.subr.bf16.mxu0 0
    %354 = vmatpush1.bf16.msra.mxu0 0
    %355 = vmatprep.subr.bf16.mxu0 0
    %356 = vmatpush1.bf16.msra.mxu0 0
    %357 = vmatprep.subr.bf16.mxu0 0
    %358 = vmatpush1.bf16.msra.mxu0 0
    %359 = vmatprep.subr.bf16.mxu0 0
    %360 = vmatpush1.bf16.msra.mxu0 0
    %361 = vmatprep.subr.bf16.mxu0 0
    %362 = vmatpush1.bf16.msra.mxu0 0
    %363 = vmatprep.subr.bf16.mxu0 0
    %364 = vmatpush1.bf16.msra.mxu0 0
    %365 = vmatprep.mubr.bf16.mxu0 0
    %366 = vmatmul.mubr.bf16.gmra.mrb[0].mxu0 %v331
    %v367 = vpop.f32.mrb[0].mxu0
    %v368 = vadd.f32 0.0, %v367
    %v369 = vpop.f32.mrb[0].mxu0
    %v370 = vpop.f32.mrb[0].mxu0
    %v371 = vpop.f32.mrb[0].mxu0
    %372 = vdwg.mxu0
    %v374 = vrot.slane %v368, 4
    %v376 = vadd.f32 %v113, %v374
    %v377 = vxor.u32 %v376, 2147483648
    %v378 = vmul.f32 %v377, 1.442695
    %v379 = vpow.pop %v378
    %v380 = vadd.f32 %v379, 1.0
    %v381 = vrcp.pop %v380
    %v382 = vmul.f32 1.0, %v381
    %v383 = vtanh.pop %v376
    %v385 = vrot.slane %v296, 6
    %v387 = vmul.f32 %v382, %v385
    %389 = vrot.lane.b32.xlu0 %v383, 32
    %v390 = vpop.permute.xlu0 %389
    %v392 = vmul.f32 %v382, %v390
    %394 = vrot.lane.b32.xlu0 %v392, 32
    %v395 = vpop.permute.xlu0 %394
    %v397 = vadd.f32 %v387, %v395
    %v398 = vtanh.pop %v397
    %400 = vrot.lane.b32.xlu0 %v398, 32
    %v401 = vpop.permute.xlu0 %400
    %v403 = vmul.f32 %v382, %v401
    %405 = vrot.lane.b32.xlu0 %v403, 64
    %v406 = vpop.permute.xlu0 %405
    %vm408 = vcmask 259076
    %409 = vst.msk [vmem:[#allocation2] sm:$0x30] %vm408, %v406
    %v410 = vpack.c.bf16 %v403, %v403
    %v411 = vld [vmem:[%s2] sm:$0xf]
    %v412 = vld [vmem:[%s2 + $0x4] sm:$0xf]
    %v413 = vld [vmem:[%s2 + $0x8] sm:$0xf]
    %v414 = vld [vmem:[%s2 + $0xc] sm:$0xf]
    %v416 = vrot.slane %v410, 2
    %417 = vrot.lane.b32.xlu0 %v416, 64
    %v418 = vpop.permute.xlu0 %417
    %v423 = vunpack.c.l.b16 %v411
    %v424 = vunpack.c.l.b16 %v412
    %v425 = vunpack.c.l.b16 %v413
    %v426 = vunpack.c.l.b16 %v414
    %v427 = vpack.c.b16 %v424, %v423
    %v428 = vpack.c.b16 %v426, %v425
    %v432 = vsel %vm74, %v418, 0
    %434 = vmatprep.subr.bf16.mxu0 0
    %435 = vmatpush1.bf16.msra.mxu0 %v427
    %436 = vmatprep.subr.bf16.mxu0 0
    %437 = vmatpush1.bf16.msra.mxu0 %v428
    %438 = vmatprep.subr.bf16.mxu0 0
    %439 = vmatpush1.bf16.msra.mxu0 0
    %440 = vmatprep.subr.bf16.mxu0 0
    %441 = vmatpush1.bf16.msra.mxu0 0
    %442 = vmatprep.subr.bf16.mxu0 0
    %443 = vmatpush1.bf16.msra.mxu0 0
    %444 = vmatprep.subr.bf16.mxu0 0
    %445 = vmatpush1.bf16.msra.mxu0 0
    %446 = vmatprep.subr.bf16.mxu0 0
    %447 = vmatpush1.bf16.msra.mxu0 0
    %448 = vmatprep.subr.bf16.mxu0 0
    %449 = vmatpush1.bf16.msra.mxu0 0
    %450 = vmatprep.subr.bf16.mxu0 0
    %451 = vmatpush1.bf16.msra.mxu0 0
    %452 = vmatprep.subr.bf16.mxu0 0
    %453 = vmatpush1.bf16.msra.mxu0 0
    %454 = vmatprep.subr.bf16.mxu0 0
    %455 = vmatpush1.bf16.msra.mxu0 0
    %456 = vmatprep.subr.bf16.mxu0 0
    %457 = vmatpush1.bf16.msra.mxu0 0
    %458 = vmatprep.subr.bf16.mxu0 0
    %459 = vmatpush1.bf16.msra.mxu0 0
    %460 = vmatprep.subr.bf16.mxu0 0
    %461 = vmatpush1.bf16.msra.mxu0 0
    %462 = vmatprep.subr.bf16.mxu0 0
    %463 = vmatpush1.bf16.msra.mxu0 0
    %464 = vmatprep.subr.bf16.mxu0 0
    %465 = vmatpush1.bf16.msra.mxu0 0
    %466 = vmatprep.mubr.bf16.mxu0 0
    %467 = vmatmul.mubr.bf16.gmra.mrb[0].mxu0 %v432
    %v468 = vpop.f32.mrb[0].mxu0
    %v469 = vadd.f32 0.0, %v468
    %v470 = vpop.f32.mrb[0].mxu0
    %v471 = vpop.f32.mrb[0].mxu0
    %v472 = vpop.f32.mrb[0].mxu0
    %473 = vdwg.mxu0
    %v475 = vrot.slane %v469, 2
    %v477 = vadd.f32 %v113, %v475
    %v478 = vxor.u32 %v477, 2147483648
    %v479 = vmul.f32 %v478, 1.442695
    %v480 = vpow.pop %v479
    %v481 = vadd.f32 %v480, 1.0
    %v482 = vrcp.pop %v481
    %v483 = vmul.f32 1.0, %v482
    %v484 = vtanh.pop %v477
    %v486 = vrot.slane %v397, 6
    %v488 = vmul.f32 %v483, %v486
    %490 = vrot.lane.b32.xlu0 %v484, 32
    %v491 = vpop.permute.xlu0 %490
    %v493 = vmul.f32 %v483, %v491
    %495 = vrot.lane.b32.xlu0 %v493, 32
    %v496 = vpop.permute.xlu0 %495
    %v498 = vadd.f32 %v488, %v496
    %v499 = vtanh.pop %v498
    %501 = vrot.lane.b32.xlu0 %v499, 32
    %v502 = vpop.permute.xlu0 %501
    %v504 = vmul.f32 %v483, %v502
    %506 = vrot.lane.b32.xlu0 %v504, 64
    %v507 = vpop.permute.xlu0 %506
    %vm509 = vcmask 261126
    %510 = vst.msk [vmem:[#allocation2] sm:$0xc0] %vm509, %v507
    %v511 = vpack.c.bf16 %v504, %v504
    %v512 = vld [vmem:[%s2] sm:$0xf]
    %v513 = vld [vmem:[%s2 + $0x4] sm:$0xf]
    %v514 = vld [vmem:[%s2 + $0x8] sm:$0xf]
    %v515 = vld [vmem:[%s2 + $0xc] sm:$0xf]
    %v517 = vrot.slane %v511, 3
    %518 = vrot.lane.b32.xlu0 %v517, 64
    %v519 = vpop.permute.xlu0 %518
    %v524 = vunpack.c.l.b16 %v512
    %v525 = vunpack.c.l.b16 %v513
    %v526 = vunpack.c.l.b16 %v514
    %v527 = vunpack.c.l.b16 %v515
    %v528 = vpack.c.b16 %v525, %v524
    %v529 = vpack.c.b16 %v527, %v526
    %v533 = vsel %vm74, %v519, 0
    %535 = vmatprep.subr.bf16.mxu0 0
    %536 = vmatpush1.bf16.msra.mxu0 %v528
    %537 = vmatprep.subr.bf16.mxu0 0
    %538 = vmatpush1.bf16.msra.mxu0 %v529
    %539 = vmatprep.subr.bf16.mxu0 0
    %540 = vmatpush1.bf16.msra.mxu0 0
    %541 = vmatprep.subr.bf16.mxu0 0
    %542 = vmatpush1.bf16.msra.mxu0 0
    %543 = vmatprep.subr.bf16.mxu0 0
    %544 = vmatpush1.bf16.msra.mxu0 0
    %545 = vmatprep.subr.bf16.mxu0 0
    %546 = vmatpush1.bf16.msra.mxu0 0
    %547 = vmatprep.subr.bf16.mxu0 0
    %548 = vmatpush1.bf16.msra.mxu0 0
    %549 = vmatprep.subr.bf16.mxu0 0
    %550 = vmatpush1.bf16.msra.mxu0 0
    %551 = vmatprep.subr.bf16.mxu0 0
    %552 = vmatpush1.bf16.msra.mxu0 0
    %553 = vmatprep.subr.bf16.mxu0 0
    %554 = vmatpush1.bf16.msra.mxu0 0
    %555 = vmatprep.subr.bf16.mxu0 0
    %556 = vmatpush1.bf16.msra.mxu0 0
    %557 = vmatprep.subr.bf16.mxu0 0
    %558 = vmatpush1.bf16.msra.mxu0 0
    %559 = vmatprep.subr.bf16.mxu0 0
    %560 = vmatpush1.bf16.msra.mxu0 0
    %561 = vmatprep.subr.bf16.mxu0 0
    %562 = vmatpush1.bf16.msra.mxu0 0
    %563 = vmatprep.subr.bf16.mxu0 0
    %564 = vmatpush1.bf16.msra.mxu0 0
    %565 = vmatprep.subr.bf16.mxu0 0
    %566 = vmatpush1.bf16.msra.mxu0 0
    %567 = vmatprep.mubr.bf16.mxu0 0
    %568 = vmatmul.mubr.bf16.gmra.mrb[0].mxu0 %v533
    %v569 = vpop.f32.mrb[0].mxu0
    %v570 = vadd.f32 0.0, %v569
    %v571 = vpop.f32.mrb[0].mxu0
    %v572 = vpop.f32.mrb[0].mxu0
    %v573 = vpop.f32.mrb[0].mxu0
    %574 = vdwg.mxu0
    %v575 = vadd.f32 %v116, %v570
    %v576 = vxor.u32 %v575, 2147483648
    %v577 = vmul.f32 %v576, 1.442695
    %v578 = vpow.pop %v577
    %v579 = vadd.f32 %v578, 1.0
    %v580 = vrcp.pop %v579
    %v581 = vmul.f32 1.0, %v580
    %v582 = vtanh.pop %v575
    %v584 = vrot.slane %v498, 6
    %v586 = vmul.f32 %v581, %v584
    %588 = vrot.lane.b32.xlu0 %v582, 32
    %v589 = vpop.permute.xlu0 %588
    %v591 = vmul.f32 %v581, %v589
    %593 = vrot.lane.b32.xlu0 %v591, 32
    %v594 = vpop.permute.xlu0 %593
    %v596 = vadd.f32 %v586, %v594
    %v597 = vtanh.pop %v596
    %599 = vrot.lane.b32.xlu0 %v597, 32
    %v600 = vpop.permute.xlu0 %599
    %v602 = vmul.f32 %v581, %v600
    %604 = vrot.lane.b32.xlu0 %v602, 64
    %v605 = vpop.permute.xlu0 %604
    %607 = vst.msk [vmem:[#allocation2 + $0x8] sm:$0x3] %vm207, %v605
    %v608 = vpack.c.bf16 %v602, %v602
    %v609 = vld [vmem:[%s2] sm:$0xf]
    %v610 = vld [vmem:[%s2 + $0x4] sm:$0xf]
    %v611 = vld [vmem:[%s2 + $0x8] sm:$0xf]
    %v612 = vld [vmem:[%s2 + $0xc] sm:$0xf]
    %614 = vrot.lane.b32.xlu0 %v608, 64
    %v615 = vpop.permute.xlu0 %614
    %v620 = vunpack.c.l.b16 %v609
    %v621 = vunpack.c.l.b16 %v610
    %v622 = vunpack.c.l.b16 %v611
    %v623 = vunpack.c.l.b16 %v612
    %v624 = vpack.c.b16 %v621, %v620
    %v625 = vpack.c.b16 %v623, %v622
    %v629 = vsel %vm74, %v615, 0
    %631 = vmatprep.subr.bf16.mxu0 0
    %632 = vmatpush1.bf16.msra.mxu0 %v624
    %633 = vmatprep.subr.bf16.mxu0 0
    %634 = vmatpush1.bf16.msra.mxu0 %v625
    %635 = vmatprep.subr.bf16.mxu0 0
    %636 = vmatpush1.bf16.msra.mxu0 0
    %637 = vmatprep.subr.bf16.mxu0 0
    %638 = vmatpush1.bf16.msra.mxu0 0
    %639 = vmatprep.subr.bf16.mxu0 0
    %640 = vmatpush1.bf16.msra.mxu0 0
    %641 = vmatprep.subr.bf16.mxu0 0
    %642 = vmatpush1.bf16.msra.mxu0 0
    %643 = vmatprep.subr.bf16.mxu0 0
    %644 = vmatpush1.bf16.msra.mxu0 0
    %645 = vmatprep.subr.bf16.mxu0 0
    %646 = vmatpush1.bf16.msra.mxu0 0
    %647 = vmatprep.subr.bf16.mxu0 0
    %648 = vmatpush1.bf16.msra.mxu0 0
    %649 = vmatprep.subr.bf16.mxu0 0
    %650 = vmatpush1.bf16.msra.mxu0 0
    %651 = vmatprep.subr.bf16.mxu0 0
    %652 = vmatpush1.bf16.msra.mxu0 0
    %653 = vmatprep.subr.bf16.mxu0 0
    %654 = vmatpush1.bf16.msra.mxu0 0
    %655 = vmatprep.subr.bf16.mxu0 0
    %656 = vmatpush1.bf16.msra.mxu0 0
    %657 = vmatprep.subr.bf16.mxu0 0
    %658 = vmatpush1.bf16.msra.mxu0 0
    %659 = vmatprep.subr.bf16.mxu0 0
    %660 = vmatpush1.bf16.msra.mxu0 0
    %661 = vmatprep.subr.bf16.mxu0 0
    %662 = vmatpush1.bf16.msra.mxu0 0
    %663 = vmatprep.mubr.bf16.mxu0 0
    %664 = vmatmul.mubr.bf16.gmra.mrb[0].mxu0 %v629
    %v665 = vpop.f32.mrb[0].mxu0
    %v666 = vadd.f32 0.0, %v665
    %v667 = vpop.f32.mrb[0].mxu0
    %v668 = vpop.f32.mrb[0].mxu0
    %v669 = vpop.f32.mrb[0].mxu0
    %670 = vdwg.mxu0
    %v672 = vrot.slane %v666, 6
    %v674 = vadd.f32 %v116, %v672
    %v675 = vxor.u32 %v674, 2147483648
    %v676 = vmul.f32 %v675, 1.442695
    %v677 = vpow.pop %v676
    %v678 = vadd.f32 %v677, 1.0
    %v679 = vrcp.pop %v678
    %v680 = vmul.f32 1.0, %v679
    %v681 = vtanh.pop %v674
    %v683 = vrot.slane %v596, 6
    %v685 = vmul.f32 %v680, %v683
    %687 = vrot.lane.b32.xlu0 %v681, 32
    %v688 = vpop.permute.xlu0 %687
    %v690 = vmul.f32 %v680, %v688
    %692 = vrot.lane.b32.xlu0 %v690, 32
    %v693 = vpop.permute.xlu0 %692
    %v695 = vadd.f32 %v685, %v693
    %v696 = vtanh.pop %v695
    %698 = vrot.lane.b32.xlu0 %v696, 32
    %v699 = vpop.permute.xlu0 %698
    %v701 = vmul.f32 %v680, %v699
    %703 = vrot.lane.b32.xlu0 %v701, 64
    %v704 = vpop.permute.xlu0 %703
    %706 = vst.msk [vmem:[#allocation2 + $0x8] sm:$0xc] %vm307, %v704
    %v707 = vpack.c.bf16 %v701, %v701
    %v708 = vld [vmem:[%s2] sm:$0xf]
    %v709 = vld [vmem:[%s2 + $0x4] sm:$0xf]
    %v710 = vld [vmem:[%s2 + $0x8] sm:$0xf]
    %v711 = vld [vmem:[%s2 + $0xc] sm:$0xf]
    %v713 = vrot.slane %v707, 1
    %714 = vrot.lane.b32.xlu0 %v713, 64
    %v715 = vpop.permute.xlu0 %714
    %v720 = vunpack.c.l.b16 %v708
    %v721 = vunpack.c.l.b16 %v709
    %v722 = vunpack.c.l.b16 %v710
    %v723 = vunpack.c.l.b16 %v711
    %v724 = vpack.c.b16 %v721, %v720
    %v725 = vpack.c.b16 %v723, %v722
    %v729 = vsel %vm74, %v715, 0
    %731 = vmatprep.subr.bf16.mxu0 0
    %732 = vmatpush1.bf16.msra.mxu0 %v724
    %733 = vmatprep.subr.bf16.mxu0 0
    %734 = vmatpush1.bf16.msra.mxu0 %v725
    %735 = vmatprep.subr.bf16.mxu0 0
    %736 = vmatpush1.bf16.msra.mxu0 0
    %737 = vmatprep.subr.bf16.mxu0 0
    %738 = vmatpush1.bf16.msra.mxu0 0
    %739 = vmatprep.subr.bf16.mxu0 0
    %740 = vmatpush1.bf16.msra.mxu0 0
    %741 = vmatprep.subr.bf16.mxu0 0
    %742 = vmatpush1.bf16.msra.mxu0 0
    %743 = vmatprep.subr.bf16.mxu0 0
    %744 = vmatpush1.bf16.msra.mxu0 0
    %745 = vmatprep.subr.bf16.mxu0 0
    %746 = vmatpush1.bf16.msra.mxu0 0
    %747 = vmatprep.subr.bf16.mxu0 0
    %748 = vmatpush1.bf16.msra.mxu0 0
    %749 = vmatprep.subr.bf16.mxu0 0
    %750 = vmatpush1.bf16.msra.mxu0 0
    %751 = vmatprep.subr.bf16.mxu0 0
    %752 = vmatpush1.bf16.msra.mxu0 0
    %753 = vmatprep.subr.bf16.mxu0 0
    %754 = vmatpush1.bf16.msra.mxu0 0
    %755 = vmatprep.subr.bf16.mxu0 0
    %756 = vmatpush1.bf16.msra.mxu0 0
    %757 = vmatprep.subr.bf16.mxu0 0
    %758 = vmatpush1.bf16.msra.mxu0 0
    %759 = vmatprep.subr.bf16.mxu0 0
    %760 = vmatpush1.bf16.msra.mxu0 0
    %761 = vmatprep.subr.bf16.mxu0 0
    %762 = vmatpush1.bf16.msra.mxu0 0
    %763 = vmatprep.mubr.bf16.mxu0 0
    %764 = vmatmul.mubr.bf16.gmra.mrb[0].mxu0 %v729
    %v765 = vpop.f32.mrb[0].mxu0
    %v766 = vadd.f32 0.0, %v765
    %v767 = vpop.f32.mrb[0].mxu0
    %v768 = vpop.f32.mrb[0].mxu0
    %v769 = vpop.f32.mrb[0].mxu0
    %770 = vdwg.mxu0
    %v772 = vrot.slane %v766, 4
    %v774 = vadd.f32 %v116, %v772
    %v775 = vxor.u32 %v774, 2147483648
    %v776 = vmul.f32 %v775, 1.442695
    %v777 = vpow.pop %v776
    %v778 = vadd.f32 %v777, 1.0
    %v779 = vrcp.pop %v778
    %v780 = vmul.f32 1.0, %v779
    %v781 = vtanh.pop %v774
    %v783 = vrot.slane %v695, 6
    %v785 = vmul.f32 %v780, %v783
    %787 = vrot.lane.b32.xlu0 %v781, 32
    %v788 = vpop.permute.xlu0 %787
    %v790 = vmul.f32 %v780, %v788
    %792 = vrot.lane.b32.xlu0 %v790, 32
    %v793 = vpop.permute.xlu0 %792
    %v795 = vadd.f32 %v785, %v793
    %v796 = vtanh.pop %v795
    %798 = vrot.lane.b32.xlu0 %v796, 32
    %v799 = vpop.permute.xlu0 %798
    %v801 = vmul.f32 %v780, %v799
    %803 = vrot.lane.b32.xlu0 %v801, 64
    %v804 = vpop.permute.xlu0 %803
    %806 = vst.msk [vmem:[#allocation2 + $0x8] sm:$0x30] %vm408, %v804
    %v807 = vpack.c.bf16 %v801, %v801
    %v808 = vld [vmem:[%s2] sm:$0xf]
    %v809 = vld [vmem:[%s2 + $0x4] sm:$0xf]
    %v810 = vld [vmem:[%s2 + $0x8] sm:$0xf]
    %v811 = vld [vmem:[%s2 + $0xc] sm:$0xf]
    %v813 = vrot.slane %v807, 2
    %814 = vrot.lane.b32.xlu0 %v813, 64
    %v815 = vpop.permute.xlu0 %814
    %v820 = vunpack.c.l.b16 %v808
    %v821 = vunpack.c.l.b16 %v809
    %v822 = vunpack.c.l.b16 %v810
    %v823 = vunpack.c.l.b16 %v811
    %v824 = vpack.c.b16 %v821, %v820
    %v825 = vpack.c.b16 %v823, %v822
    %v829 = vsel %vm74, %v815, 0
    %831 = vmatprep.subr.bf16.mxu0 0
    %832 = vmatpush1.bf16.msra.mxu0 %v824
    %833 = vmatprep.subr.bf16.mxu0 0
    %834 = vmatpush1.bf16.msra.mxu0 %v825
    %835 = vmatprep.subr.bf16.mxu0 0
    %836 = vmatpush1.bf16.msra.mxu0 0
    %837 = vmatprep.subr.bf16.mxu0 0
    %838 = vmatpush1.bf16.msra.mxu0 0
    %839 = vmatprep.subr.bf16.mxu0 0
    %840 = vmatpush1.bf16.msra.mxu0 0
    %841 = vmatprep.subr.bf16.mxu0 0
    %842 = vmatpush1.bf16.msra.mxu0 0
    %843 = vmatprep.subr.bf16.mxu0 0
    %844 = vmatpush1.bf16.msra.mxu0 0
    %845 = vmatprep.subr.bf16.mxu0 0
    %846 = vmatpush1.bf16.msra.mxu0 0
    %847 = vmatprep.subr.bf16.mxu0 0
    %848 = vmatpush1.bf16.msra.mxu0 0
    %849 = vmatprep.subr.bf16.mxu0 0
    %850 = vmatpush1.bf16.msra.mxu0 0
    %851 = vmatprep.subr.bf16.mxu0 0
    %852 = vmatpush1.bf16.msra.mxu0 0
    %853 = vmatprep.subr.bf16.mxu0 0
    %854 = vmatpush1.bf16.msra.mxu0 0
    %855 = vmatprep.subr.bf16.mxu0 0
    %856 = vmatpush1.bf16.msra.mxu0 0
    %857 = vmatprep.subr.bf16.mxu0 0
    %858 = vmatpush1.bf16.msra.mxu0 0
    %859 = vmatprep.subr.bf16.mxu0 0
    %860 = vmatpush1.bf16.msra.mxu0 0
    %861 = vmatprep.subr.bf16.mxu0 0
    %862 = vmatpush1.bf16.msra.mxu0 0
    %863 = vmatprep.mubr.bf16.mxu0 0
    %864 = vmatmul.mubr.bf16.gmra.mrb[0].mxu0 %v829
    %v865 = vpop.f32.mrb[0].mxu0
    %v866 = vadd.f32 0.0, %v865
    %v867 = vpop.f32.mrb[0].mxu0
    %v868 = vpop.f32.mrb[0].mxu0
    %v869 = vpop.f32.mrb[0].mxu0
    %870 = vdwg.mxu0
    %v872 = vrot.slane %v866, 2
    %v874 = vadd.f32 %v116, %v872
    %v875 = vxor.u32 %v874, 2147483648
    %v876 = vmul.f32 %v875, 1.442695
    %v877 = vpow.pop %v876
    %v878 = vadd.f32 %v877, 1.0
    %v879 = vrcp.pop %v878
    %v880 = vmul.f32 1.0, %v879
    %v881 = vtanh.pop %v874
    %v883 = vrot.slane %v795, 6
    %v885 = vmul.f32 %v880, %v883
    %887 = vrot.lane.b32.xlu0 %v881, 32
    %v888 = vpop.permute.xlu0 %887
    %v890 = vmul.f32 %v880, %v888
    %892 = vrot.lane.b32.xlu0 %v890, 32
    %v893 = vpop.permute.xlu0 %892
    %v895 = vadd.f32 %v885, %v893
    %v896 = vtanh.pop %v895
    %898 = vrot.lane.b32.xlu0 %v896, 32
    %v899 = vpop.permute.xlu0 %898
    %v901 = vmul.f32 %v880, %v899
    %903 = vrot.lane.b32.xlu0 %v901, 64
    %v904 = vpop.permute.xlu0 %903
    %906 = vst.msk [vmem:[#allocation2 + $0x8] sm:$0xc0] %vm509, %v904
    %v907 = vld [vmem:[#allocation2] sm:$0xff]
    %v908 = vld [vmem:[#allocation2 + $0x8] sm:$0xff]
    %v909 = vpack.c.bf16 %v908, %v907
    %v910 = vld [vmem:[%s4] sm:$0xf]
    %v911 = vld [vmem:[%s4 + $0x4] sm:$0xf]
    %v912 = vld [vmem:[%s4 + $0x8] sm:$0xf]
    %v913 = vld [vmem:[%s4 + $0xc] sm:$0xf]
    %v914 = vld [vmem:[%s6] sm:$0x1]
    %v916 = vlaneseq
    %v917 = vshrl.u32 %v916, 7
    %v918 = vsub.s32 0, %v917
    %v919 = vrot.slane %v914, %v918
    %v925 = vunpack.c.l.b16 %v910
    %v926 = vunpack.c.l.b16 %v911
    %v927 = vunpack.c.l.b16 %v912
    %v928 = vunpack.c.l.b16 %v913
    %v929 = vpack.c.b16 %v926, %v925
    %v930 = vpack.c.b16 %v928, %v927
    %v934 = vsel %vm74, %v909, 0
    %936 = vmatprep.subr.bf16.mxu0 0
    %937 = vmatpush1.bf16.msra.mxu0 %v929
    %938 = vmatprep.subr.bf16.mxu0 0
    %939 = vmatpush1.bf16.msra.mxu0 %v930
    %940 = vmatprep.subr.bf16.mxu0 0
    %941 = vmatpush1.bf16.msra.mxu0 0
    %942 = vmatprep.subr.bf16.mxu0 0
    %943 = vmatpush1.bf16.msra.mxu0 0
    %944 = vmatprep.subr.bf16.mxu0 0
    %945 = vmatpush1.bf16.msra.mxu0 0
    %946 = vmatprep.subr.bf16.mxu0 0
    %947 = vmatpush1.bf16.msra.mxu0 0
    %948 = vmatprep.subr.bf16.mxu0 0
    %949 = vmatpush1.bf16.msra.mxu0 0
    %950 = vmatprep.subr.bf16.mxu0 0
    %951 = vmatpush1.bf16.msra.mxu0 0
    %952 = vmatprep.subr.bf16.mxu0 0
    %953 = vmatpush1.bf16.msra.mxu0 0
    %954 = vmatprep.subr.bf16.mxu0 0
    %955 = vmatpush1.bf16.msra.mxu0 0
    %956 = vmatprep.subr.bf16.mxu0 0
    %957 = vmatpush1.bf16.msra.mxu0 0
    %958 = vmatprep.subr.bf16.mxu0 0
    %959 = vmatpush1.bf16.msra.mxu0 0
    %960 = vmatprep.subr.bf16.mxu0 0
    %961 = vmatpush1.bf16.msra.mxu0 0
    %962 = vmatprep.subr.bf16.mxu0 0
    %963 = vmatpush1.bf16.msra.mxu0 0
    %964 = vmatprep.subr.bf16.mxu0 0
    %965 = vmatpush1.bf16.msra.mxu0 0
    %966 = vmatprep.subr.bf16.mxu0 0
    %967 = vmatpush1.bf16.msra.mxu0 0
    %968 = vmatprep.mubr.bf16.mxu0 0
    %969 = vmatmul.mubr.bf16.gmra.mrb[0].mxu0 %v934
    %v970 = vpop.f32.mrb[0].mxu0
    %v971 = vadd.f32 %v919, %v970
    %v972 = vpop.f32.mrb[0].mxu0
    %v973 = vpop.f32.mrb[0].mxu0
    %v974 = vadd.f32 %v919, %v973
    %v975 = vpop.f32.mrb[0].mxu0
    %976 = vdwg.mxu0
    %v977 = vld [vmem:[%s5] sm:$0xf]
    %v978 = vld [vmem:[%s5 + $0x4] sm:$0xf]
    %v979 = vld [vmem:[%s5 + $0x8] sm:$0xf]
    %v980 = vld [vmem:[%s5 + $0xc] sm:$0xf]
    %v985 = vunpack.c.l.b16 %v977
    %v986 = vunpack.c.l.b16 %v978
    %v987 = vunpack.c.l.b16 %v979
    %v988 = vunpack.c.l.b16 %v980
    %v989 = vpack.c.b16 %v986, %v985
    %v990 = vpack.c.b16 %v988, %v987
    %993 = vmatprep.subr.bf16.mxu0 0
    %994 = vmatpush1.bf16.msra.mxu0 %v989
    %995 = vmatprep.subr.bf16.mxu0 0
    %996 = vmatpush1.bf16.msra.mxu0 %v990
    %997 = vmatprep.subr.bf16.mxu0 0
    %998 = vmatpush1.bf16.msra.mxu0 0
    %999 = vmatprep.subr.bf16.mxu0 0
    %1000 = vmatpush1.bf16.msra.mxu0 0
    %1001 = vmatprep.subr.bf16.mxu0 0
    %1002 = vmatpush1.bf16.msra.mxu0 0
    %1003 = vmatprep.subr.bf16.mxu0 0
    %1004 = vmatpush1.bf16.msra.mxu0 0
    %1005 = vmatprep.subr.bf16.mxu0 0
    %1006 = vmatpush1.bf16.msra.mxu0 0
    %1007 = vmatprep.subr.bf16.mxu0 0
    %1008 = vmatpush1.bf16.msra.mxu0 0
    %1009 = vmatprep.subr.bf16.mxu0 0
    %1010 = vmatpush1.bf16.msra.mxu0 0
    %1011 = vmatprep.subr.bf16.mxu0 0
    %1012 = vmatpush1.bf16.msra.mxu0 0
    %1013 = vmatprep.subr.bf16.mxu0 0
    %1014 = vmatpush1.bf16.msra.mxu0 0
    %1015 = vmatprep.subr.bf16.mxu0 0
    %1016 = vmatpush1.bf16.msra.mxu0 0
    %1017 = vmatprep.subr.bf16.mxu0 0
    %1018 = vmatpush1.bf16.msra.mxu0 0
    %1019 = vmatprep.subr.bf16.mxu0 0
    %1020 = vmatpush1.bf16.msra.mxu0 0
    %1021 = vmatprep.subr.bf16.mxu0 0
    %1022 = vmatpush1.bf16.msra.mxu0 0
    %1023 = vmatprep.subr.bf16.mxu0 0
    %1024 = vmatpush1.bf16.msra.mxu0 0
    %1025 = vmatprep.mubr.bf16.mxu0 0
    %1026 = vmatmul.mubr.bf16.gmra.mrb[0].mxu0 %v136
    %v1027 = vpop.f32.mrb[0].mxu0
    %v1028 = vadd.f32 0.0, %v1027
    %v1029 = vpop.f32.mrb[0].mxu0
    %v1030 = vpop.f32.mrb[0].mxu0
    %v1031 = vpop.f32.mrb[0].mxu0
    %1032 = vdwg.mxu0
    %v1033 = vadd.f32 %v971, %v1028
    %v1034 = vxor.u32 %v1033, 2147483648
    %v1035 = vmul.f32 %v1034, 1.442695
    %v1036 = vpow.pop %v1035
    %v1037 = vadd.f32 %v1036, 1.0
    %v1038 = vrcp.pop %v1037
    %v1039 = vmul.f32 1.0, %v1038
    %v1040 = vtanh.pop %v1033
    %v1041 = vmul.f32 %v1039, 0.0
    %1043 = vrot.lane.b32.xlu0 %v1040, 32
    %v1044 = vpop.permute.xlu0 %1043
    %v1046 = vmul.f32 %v1039, %v1044
    %1048 = vrot.lane.b32.xlu0 %v1046, 32
    %v1049 = vpop.permute.xlu0 %1048
    %v1051 = vadd.f32 %v1041, %v1049
    %v1052 = vtanh.pop %v1051
    %1054 = vrot.lane.b32.xlu0 %v1052, 32
    %v1055 = vpop.permute.xlu0 %1054
    %v1057 = vmul.f32 %v1039, %v1055
    %v1058 = vpack.c.bf16 %v1057, %v1057
    %1060 = vrot.lane.b32.xlu0 %v1058, 64
    %v1061 = vpop.permute.xlu0 %1060
    %v1063 = vsel %vm74, %v1061, 0
    %1065 = vmatprep.subr.bf16.mxu0 0
    %1066 = vmatpush1.bf16.msra.mxu0 %v989
    %1067 = vmatprep.subr.bf16.mxu0 0
    %1068 = vmatpush1.bf16.msra.mxu0 %v990
    %1069 = vmatprep.subr.bf16.mxu0 0
    %1070 = vmatpush1.bf16.msra.mxu0 0
    %1071 = vmatprep.subr.bf16.mxu0 0
    %1072 = vmatpush1.bf16.msra.mxu0 0
    %1073 = vmatprep.subr.bf16.mxu0 0
    %1074 = vmatpush1.bf16.msra.mxu0 0
    %1075 = vmatprep.subr.bf16.mxu0 0
    %1076 = vmatpush1.bf16.msra.mxu0 0
    %1077 = vmatprep.subr.bf16.mxu0 0
    %1078 = vmatpush1.bf16.msra.mxu0 0
    %1079 = vmatprep.subr.bf16.mxu0 0
    %1080 = vmatpush1.bf16.msra.mxu0 0
    %1081 = vmatprep.subr.bf16.mxu0 0
    %1082 = vmatpush1.bf16.msra.mxu0 0
    %1083 = vmatprep.subr.bf16.mxu0 0
    %1084 = vmatpush1.bf16.msra.mxu0 0
    %1085 = vmatprep.subr.bf16.mxu0 0
    %1086 = vmatpush1.bf16.msra.mxu0 0
    %1087 = vmatprep.subr.bf16.mxu0 0
    %1088 = vmatpush1.bf16.msra.mxu0 0
    %1089 = vmatprep.subr.bf16.mxu0 0
    %1090 = vmatpush1.bf16.msra.mxu0 0
    %1091 = vmatprep.subr.bf16.mxu0 0
    %1092 = vmatpush1.bf16.msra.mxu0 0
    %1093 = vmatprep.subr.bf16.mxu0 0
    %1094 = vmatpush1.bf16.msra.mxu0 0
    %1095 = vmatprep.subr.bf16.mxu0 0
    %1096 = vmatpush1.bf16.msra.mxu0 0
    %1097 = vmatprep.mubr.bf16.mxu0 0
    %1098 = vmatmul.mubr.bf16.gmra.mrb[0].mxu0 %v1063
    %v1099 = vpop.f32.mrb[0].mxu0
    %v1100 = vadd.f32 0.0, %v1099
    %v1101 = vpop.f32.mrb[0].mxu0
    %v1102 = vpop.f32.mrb[0].mxu0
    %v1103 = vpop.f32.mrb[0].mxu0
    %1104 = vdwg.mxu0
    %v1106 = vrot.slane %v1100, 6
    %v1108 = vadd.f32 %v971, %v1106
    %v1109 = vxor.u32 %v1108, 2147483648
    %v1110 = vmul.f32 %v1109, 1.442695
    %v1111 = vpow.pop %v1110
    %v1112 = vadd.f32 %v1111, 1.0
    %v1113 = vrcp.pop %v1112
    %v1114 = vmul.f32 1.0, %v1113
    %v1115 = vtanh.pop %v1108
    %v1117 = vrot.slane %v1051, 6
    %v1119 = vmul.f32 %v1114, %v1117
    %1121 = vrot.lane.b32.xlu0 %v1115, 32
    %v1122 = vpop.permute.xlu0 %1121
    %v1124 = vmul.f32 %v1114, %v1122
    %1126 = vrot.lane.b32.xlu0 %v1124, 32
    %v1127 = vpop.permute.xlu0 %1126
    %v1129 = vadd.f32 %v1119, %v1127
    %v1130 = vtanh.pop %v1129
    %1132 = vrot.lane.b32.xlu0 %v1130, 32
    %v1133 = vpop.permute.xlu0 %1132
    %v1135 = vmul.f32 %v1114, %v1133
    %v1136 = vpack.c.bf16 %v1135, %v1135
    %v1138 = vrot.slane %v1136, 1
    %1139 = vrot.lane.b32.xlu0 %v1138, 64
    %v1140 = vpop.permute.xlu0 %1139
    %v1142 = vsel %vm74, %v1140, 0
    %1144 = vmatprep.subr.bf16.mxu0 0
    %1145 = vmatpush1.bf16.msra.mxu0 %v989
    %1146 = vmatprep.subr.bf16.mxu0 0
    %1147 = vmatpush1.bf16.msra.mxu0 %v990
    %1148 = vmatprep.subr.bf16.mxu0 0
    %1149 = vmatpush1.bf16.msra.mxu0 0
    %1150 = vmatprep.subr.bf16.mxu0 0
    %1151 = vmatpush1.bf16.msra.mxu0 0
    %1152 = vmatprep.subr.bf16.mxu0 0
    %1153 = vmatpush1.bf16.msra.mxu0 0
    %1154 = vmatprep.subr.bf16.mxu0 0
    %1155 = vmatpush1.bf16.msra.mxu0 0
    %1156 = vmatprep.subr.bf16.mxu0 0
    %1157 = vmatpush1.bf16.msra.mxu0 0
    %1158 = vmatprep.subr.bf16.mxu0 0
    %1159 = vmatpush1.bf16.msra.mxu0 0
    %1160 = vmatprep.subr.bf16.mxu0 0
    %1161 = vmatpush1.bf16.msra.mxu0 0
    %1162 = vmatprep.subr.bf16.mxu0 0
    %1163 = vmatpush1.bf16.msra.mxu0 0
    %1164 = vmatprep.subr.bf16.mxu0 0
    %1165 = vmatpush1.bf16.msra.mxu0 0
    %1166 = vmatprep.subr.bf16.mxu0 0
    %1167 = vmatpush1.bf16.msra.mxu0 0
    %1168 = vmatprep.subr.bf16.mxu0 0
    %1169 = vmatpush1.bf16.msra.mxu0 0
    %1170 = vmatprep.subr.bf16.mxu0 0
    %1171 = vmatpush1.bf16.msra.mxu0 0
    %1172 = vmatprep.subr.bf16.mxu0 0
    %1173 = vmatpush1.bf16.msra.mxu0 0
    %1174 = vmatprep.subr.bf16.mxu0 0
    %1175 = vmatpush1.bf16.msra.mxu0 0
    %1176 = vmatprep.mubr.bf16.mxu0 0
    %1177 = vmatmul.mubr.bf16.gmra.mrb[0].mxu0 %v1142
    %v1178 = vpop.f32.mrb[0].mxu0
    %v1179 = vadd.f32 0.0, %v1178
    %v1180 = vpop.f32.mrb[0].mxu0
    %v1181 = vpop.f32.mrb[0].mxu0
    %v1182 = vpop.f32.mrb[0].mxu0
    %1183 = vdwg.mxu0
    %v1185 = vrot.slane %v1179, 4
    %v1187 = vadd.f32 %v971, %v1185
    %v1188 = vxor.u32 %v1187, 2147483648
    %v1189 = vmul.f32 %v1188, 1.442695
    %v1190 = vpow.pop %v1189
    %v1191 = vadd.f32 %v1190, 1.0
    %v1192 = vrcp.pop %v1191
    %v1193 = vmul.f32 1.0, %v1192
    %v1194 = vtanh.pop %v1187
    %v1196 = vrot.slane %v1129, 6
    %v1198 = vmul.f32 %v1193, %v1196
    %1200 = vrot.lane.b32.xlu0 %v1194, 32
    %v1201 = vpop.permute.xlu0 %1200
    %v1203 = vmul.f32 %v1193, %v1201
    %1205 = vrot.lane.b32.xlu0 %v1203, 32
    %v1206 = vpop.permute.xlu0 %1205
    %v1208 = vadd.f32 %v1198, %v1206
    %v1209 = vtanh.pop %v1208
    %1211 = vrot.lane.b32.xlu0 %v1209, 32
    %v1212 = vpop.permute.xlu0 %1211
    %v1214 = vmul.f32 %v1193, %v1212
    %v1215 = vpack.c.bf16 %v1214, %v1214
    %v1217 = vrot.slane %v1215, 2
    %1218 = vrot.lane.b32.xlu0 %v1217, 64
    %v1219 = vpop.permute.xlu0 %1218
    %v1221 = vsel %vm74, %v1219, 0
    %1223 = vmatprep.subr.bf16.mxu0 0
    %1224 = vmatpush1.bf16.msra.mxu0 %v989
    %1225 = vmatprep.subr.bf16.mxu0 0
    %1226 = vmatpush1.bf16.msra.mxu0 %v990
    %1227 = vmatprep.subr.bf16.mxu0 0
    %1228 = vmatpush1.bf16.msra.mxu0 0
    %1229 = vmatprep.subr.bf16.mxu0 0
    %1230 = vmatpush1.bf16.msra.mxu0 0
    %1231 = vmatprep.subr.bf16.mxu0 0
    %1232 = vmatpush1.bf16.msra.mxu0 0
    %1233 = vmatprep.subr.bf16.mxu0 0
    %1234 = vmatpush1.bf16.msra.mxu0 0
    %1235 = vmatprep.subr.bf16.mxu0 0
    %1236 = vmatpush1.bf16.msra.mxu0 0
    %1237 = vmatprep.subr.bf16.mxu0 0
    %1238 = vmatpush1.bf16.msra.mxu0 0
    %1239 = vmatprep.subr.bf16.mxu0 0
    %1240 = vmatpush1.bf16.msra.mxu0 0
    %1241 = vmatprep.subr.bf16.mxu0 0
    %1242 = vmatpush1.bf16.msra.mxu0 0
    %1243 = vmatprep.subr.bf16.mxu0 0
    %1244 = vmatpush1.bf16.msra.mxu0 0
    %1245 = vmatprep.subr.bf16.mxu0 0
    %1246 = vmatpush1.bf16.msra.mxu0 0
    %1247 = vmatprep.subr.bf16.mxu0 0
    %1248 = vmatpush1.bf16.msra.mxu0 0
    %1249 = vmatprep.subr.bf16.mxu0 0
    %1250 = vmatpush1.bf16.msra.mxu0 0
    %1251 = vmatprep.subr.bf16.mxu0 0
    %1252 = vmatpush1.bf16.msra.mxu0 0
    %1253 = vmatprep.subr.bf16.mxu0 0
    %1254 = vmatpush1.bf16.msra.mxu0 0
    %1255 = vmatprep.mubr.bf16.mxu0 0
    %1256 = vmatmul.mubr.bf16.gmra.mrb[0].mxu0 %v1221
    %v1257 = vpop.f32.mrb[0].mxu0
    %v1258 = vadd.f32 0.0, %v1257
    %v1259 = vpop.f32.mrb[0].mxu0
    %v1260 = vpop.f32.mrb[0].mxu0
    %v1261 = vpop.f32.mrb[0].mxu0
    %1262 = vdwg.mxu0
    %v1264 = vrot.slane %v1258, 2
    %v1266 = vadd.f32 %v971, %v1264
    %v1267 = vxor.u32 %v1266, 2147483648
    %v1268 = vmul.f32 %v1267, 1.442695
    %v1269 = vpow.pop %v1268
    %v1270 = vadd.f32 %v1269, 1.0
    %v1271 = vrcp.pop %v1270
    %v1272 = vmul.f32 1.0, %v1271
    %v1273 = vtanh.pop %v1266
    %v1275 = vrot.slane %v1208, 6
    %v1277 = vmul.f32 %v1272, %v1275
    %1279 = vrot.lane.b32.xlu0 %v1273, 32
    %v1280 = vpop.permute.xlu0 %1279
    %v1282 = vmul.f32 %v1272, %v1280
    %1284 = vrot.lane.b32.xlu0 %v1282, 32
    %v1285 = vpop.permute.xlu0 %1284
    %v1287 = vadd.f32 %v1277, %v1285
    %v1288 = vtanh.pop %v1287
    %1290 = vrot.lane.b32.xlu0 %v1288, 32
    %v1291 = vpop.permute.xlu0 %1290
    %v1293 = vmul.f32 %v1272, %v1291
    %v1294 = vpack.c.bf16 %v1293, %v1293
    %v1296 = vrot.slane %v1294, 3
    %1297 = vrot.lane.b32.xlu0 %v1296, 64
    %v1298 = vpop.permute.xlu0 %1297
    %v1300 = vsel %vm74, %v1298, 0
    %1302 = vmatprep.subr.bf16.mxu0 0
    %1303 = vmatpush1.bf16.msra.mxu0 %v989
    %1304 = vmatprep.subr.bf16.mxu0 0
    %1305 = vmatpush1.bf16.msra.mxu0 %v990
    %1306 = vmatprep.subr.bf16.mxu0 0
    %1307 = vmatpush1.bf16.msra.mxu0 0
    %1308 = vmatprep.subr.bf16.mxu0 0
    %1309 = vmatpush1.bf16.msra.mxu0 0
    %1310 = vmatprep.subr.bf16.mxu0 0
    %1311 = vmatpush1.bf16.msra.mxu0 0
    %1312 = vmatprep.subr.bf16.mxu0 0
    %1313 = vmatpush1.bf16.msra.mxu0 0
    %1314 = vmatprep.subr.bf16.mxu0 0
    %1315 = vmatpush1.bf16.msra.mxu0 0
    %1316 = vmatprep.subr.bf16.mxu0 0
    %1317 = vmatpush1.bf16.msra.mxu0 0
    %1318 = vmatprep.subr.bf16.mxu0 0
    %1319 = vmatpush1.bf16.msra.mxu0 0
    %1320 = vmatprep.subr.bf16.mxu0 0
    %1321 = vmatpush1.bf16.msra.mxu0 0
    %1322 = vmatprep.subr.bf16.mxu0 0
    %1323 = vmatpush1.bf16.msra.mxu0 0
    %1324 = vmatprep.subr.bf16.mxu0 0
    %1325 = vmatpush1.bf16.msra.mxu0 0
    %1326 = vmatprep.subr.bf16.mxu0 0
    %1327 = vmatpush1.bf16.msra.mxu0 0
    %1328 = vmatprep.subr.bf16.mxu0 0
    %1329 = vmatpush1.bf16.msra.mxu0 0
    %1330 = vmatprep.subr.bf16.mxu0 0
    %1331 = vmatpush1.bf16.msra.mxu0 0
    %1332 = vmatprep.subr.bf16.mxu0 0
    %1333 = vmatpush1.bf16.msra.mxu0 0
    %1334 = vmatprep.mubr.bf16.mxu0 0
    %1335 = vmatmul.mubr.bf16.gmra.mrb[0].mxu0 %v1300
    %v1336 = vpop.f32.mrb[0].mxu0
    %v1337 = vadd.f32 0.0, %v1336
    %v1338 = vpop.f32.mrb[0].mxu0
    %v1339 = vpop.f32.mrb[0].mxu0
    %v1340 = vpop.f32.mrb[0].mxu0
    %1341 = vdwg.mxu0
    %v1342 = vadd.f32 %v974, %v1337
    %v1343 = vxor.u32 %v1342, 2147483648
    %v1344 = vmul.f32 %v1343, 1.442695
    %v1345 = vpow.pop %v1344
    %v1346 = vadd.f32 %v1345, 1.0
    %v1347 = vrcp.pop %v1346
    %v1348 = vmul.f32 1.0, %v1347
    %v1349 = vtanh.pop %v1342
    %v1351 = vrot.slane %v1287, 6
    %v1353 = vmul.f32 %v1348, %v1351
    %1355 = vrot.lane.b32.xlu0 %v1349, 32
    %v1356 = vpop.permute.xlu0 %1355
    %v1358 = vmul.f32 %v1348, %v1356
    %1360 = vrot.lane.b32.xlu0 %v1358, 32
    %v1361 = vpop.permute.xlu0 %1360
    %v1363 = vadd.f32 %v1353, %v1361
    %v1364 = vtanh.pop %v1363
    %1366 = vrot.lane.b32.xlu0 %v1364, 32
    %v1367 = vpop.permute.xlu0 %1366
    %v1369 = vmul.f32 %v1348, %v1367
    %v1370 = vpack.c.bf16 %v1369, %v1369
    %1372 = vrot.lane.b32.xlu0 %v1370, 64
    %v1373 = vpop.permute.xlu0 %1372
    %v1375 = vsel %vm74, %v1373, 0
    %1377 = vmatprep.subr.bf16.mxu0 0
    %1378 = vmatpush1.bf16.msra.mxu0 %v989
    %1379 = vmatprep.subr.bf16.mxu0 0
    %1380 = vmatpush1.bf16.msra.mxu0 %v990
    %1381 = vmatprep.subr.bf16.mxu0 0
    %1382 = vmatpush1.bf16.msra.mxu0 0
    %1383 = vmatprep.subr.bf16.mxu0 0
    %1384 = vmatpush1.bf16.msra.mxu0 0
    %1385 = vmatprep.subr.bf16.mxu0 0
    %1386 = vmatpush1.bf16.msra.mxu0 0
    %1387 = vmatprep.subr.bf16.mxu0 0
    %1388 = vmatpush1.bf16.msra.mxu0 0
    %1389 = vmatprep.subr.bf16.mxu0 0
    %1390 = vmatpush1.bf16.msra.mxu0 0
    %1391 = vmatprep.subr.bf16.mxu0 0
    %1392 = vmatpush1.bf16.msra.mxu0 0
    %1393 = vmatprep.subr.bf16.mxu0 0
    %1394 = vmatpush1.bf16.msra.mxu0 0
    %1395 = vmatprep.subr.bf16.mxu0 0
    %1396 = vmatpush1.bf16.msra.mxu0 0
    %1397 = vmatprep.subr.bf16.mxu0 0
    %1398 = vmatpush1.bf16.msra.mxu0 0
    %1399 = vmatprep.subr.bf16.mxu0 0
    %1400 = vmatpush1.bf16.msra.mxu0 0
    %1401 = vmatprep.subr.bf16.mxu0 0
    %1402 = vmatpush1.bf16.msra.mxu0 0
    %1403 = vmatprep.subr.bf16.mxu0 0
    %1404 = vmatpush1.bf16.msra.mxu0 0
    %1405 = vmatprep.subr.bf16.mxu0 0
    %1406 = vmatpush1.bf16.msra.mxu0 0
    %1407 = vmatprep.subr.bf16.mxu0 0
    %1408 = vmatpush1.bf16.msra.mxu0 0
    %1409 = vmatprep.mubr.bf16.mxu0 0
    %1410 = vmatmul.mubr.bf16.gmra.mrb[0].mxu0 %v1375
    %v1411 = vpop.f32.mrb[0].mxu0
    %v1412 = vadd.f32 0.0, %v1411
    %v1413 = vpop.f32.mrb[0].mxu0
    %v1414 = vpop.f32.mrb[0].mxu0
    %v1415 = vpop.f32.mrb[0].mxu0
    %1416 = vdwg.mxu0
    %v1418 = vrot.slane %v1412, 6
    %v1420 = vadd.f32 %v974, %v1418
    %v1421 = vxor.u32 %v1420, 2147483648
    %v1422 = vmul.f32 %v1421, 1.442695
    %v1423 = vpow.pop %v1422
    %v1424 = vadd.f32 %v1423, 1.0
    %v1425 = vrcp.pop %v1424
    %v1426 = vmul.f32 1.0, %v1425
    %v1427 = vtanh.pop %v1420
    %v1429 = vrot.slane %v1363, 6
    %v1431 = vmul.f32 %v1426, %v1429
    %1433 = vrot.lane.b32.xlu0 %v1427, 32
    %v1434 = vpop.permute.xlu0 %1433
    %v1436 = vmul.f32 %v1426, %v1434
    %1438 = vrot.lane.b32.xlu0 %v1436, 32
    %v1439 = vpop.permute.xlu0 %1438
    %v1441 = vadd.f32 %v1431, %v1439
    %v1442 = vtanh.pop %v1441
    %1444 = vrot.lane.b32.xlu0 %v1442, 32
    %v1445 = vpop.permute.xlu0 %1444
    %v1447 = vmul.f32 %v1426, %v1445
    %v1448 = vpack.c.bf16 %v1447, %v1447
    %v1450 = vrot.slane %v1448, 1
    %1451 = vrot.lane.b32.xlu0 %v1450, 64
    %v1452 = vpop.permute.xlu0 %1451
    %v1454 = vsel %vm74, %v1452, 0
    %1456 = vmatprep.subr.bf16.mxu0 0
    %1457 = vmatpush1.bf16.msra.mxu0 %v989
    %1458 = vmatprep.subr.bf16.mxu0 0
    %1459 = vmatpush1.bf16.msra.mxu0 %v990
    %1460 = vmatprep.subr.bf16.mxu0 0
    %1461 = vmatpush1.bf16.msra.mxu0 0
    %1462 = vmatprep.subr.bf16.mxu0 0
    %1463 = vmatpush1.bf16.msra.mxu0 0
    %1464 = vmatprep.subr.bf16.mxu0 0
    %1465 = vmatpush1.bf16.msra.mxu0 0
    %1466 = vmatprep.subr.bf16.mxu0 0
    %1467 = vmatpush1.bf16.msra.mxu0 0
    %1468 = vmatprep.subr.bf16.mxu0 0
    %1469 = vmatpush1.bf16.msra.mxu0 0
    %1470 = vmatprep.subr.bf16.mxu0 0
    %1471 = vmatpush1.bf16.msra.mxu0 0
    %1472 = vmatprep.subr.bf16.mxu0 0
    %1473 = vmatpush1.bf16.msra.mxu0 0
    %1474 = vmatprep.subr.bf16.mxu0 0
    %1475 = vmatpush1.bf16.msra.mxu0 0
    %1476 = vmatprep.subr.bf16.mxu0 0
    %1477 = vmatpush1.bf16.msra.mxu0 0
    %1478 = vmatprep.subr.bf16.mxu0 0
    %1479 = vmatpush1.bf16.msra.mxu0 0
    %1480 = vmatprep.subr.bf16.mxu0 0
    %1481 = vmatpush1.bf16.msra.mxu0 0
    %1482 = vmatprep.subr.bf16.mxu0 0
    %1483 = vmatpush1.bf16.msra.mxu0 0
    %1484 = vmatprep.subr.bf16.mxu0 0
    %1485 = vmatpush1.bf16.msra.mxu0 0
    %1486 = vmatprep.subr.bf16.mxu0 0
    %1487 = vmatpush1.bf16.msra.mxu0 0
    %1488 = vmatprep.mubr.bf16.mxu0 0
    %1489 = vmatmul.mubr.bf16.gmra.mrb[0].mxu0 %v1454
    %v1490 = vpop.f32.mrb[0].mxu0
    %v1491 = vadd.f32 0.0, %v1490
    %v1492 = vpop.f32.mrb[0].mxu0
    %v1493 = vpop.f32.mrb[0].mxu0
    %v1494 = vpop.f32.mrb[0].mxu0
    %1495 = vdwg.mxu0
    %v1497 = vrot.slane %v1491, 4
    %v1499 = vadd.f32 %v974, %v1497
    %v1500 = vxor.u32 %v1499, 2147483648
    %v1501 = vmul.f32 %v1500, 1.442695
    %v1502 = vpow.pop %v1501
    %v1503 = vadd.f32 %v1502, 1.0
    %v1504 = vrcp.pop %v1503
    %v1505 = vmul.f32 1.0, %v1504
    %v1506 = vtanh.pop %v1499
    %v1508 = vrot.slane %v1441, 6
    %v1510 = vmul.f32 %v1505, %v1508
    %1512 = vrot.lane.b32.xlu0 %v1506, 32
    %v1513 = vpop.permute.xlu0 %1512
    %v1515 = vmul.f32 %v1505, %v1513
    %1517 = vrot.lane.b32.xlu0 %v1515, 32
    %v1518 = vpop.permute.xlu0 %1517
    %v1520 = vadd.f32 %v1510, %v1518
    %v1521 = vtanh.pop %v1520
    %1523 = vrot.lane.b32.xlu0 %v1521, 32
    %v1524 = vpop.permute.xlu0 %1523
    %v1526 = vmul.f32 %v1505, %v1524
    %v1527 = vpack.c.bf16 %v1526, %v1526
    %v1529 = vrot.slane %v1527, 2
    %1530 = vrot.lane.b32.xlu0 %v1529, 64
    %v1531 = vpop.permute.xlu0 %1530
    %v1533 = vsel %vm74, %v1531, 0
    %1535 = vmatprep.subr.bf16.mxu0 0
    %1536 = vmatpush1.bf16.msra.mxu0 %v989
    %1537 = vmatprep.subr.bf16.mxu0 0
    %1538 = vmatpush1.bf16.msra.mxu0 %v990
    %1539 = vmatprep.subr.bf16.mxu0 0
    %1540 = vmatpush1.bf16.msra.mxu0 0
    %1541 = vmatprep.subr.bf16.mxu0 0
    %1542 = vmatpush1.bf16.msra.mxu0 0
    %1543 = vmatprep.subr.bf16.mxu0 0
    %1544 = vmatpush1.bf16.msra.mxu0 0
    %1545 = vmatprep.subr.bf16.mxu0 0
    %1546 = vmatpush1.bf16.msra.mxu0 0
    %1547 = vmatprep.subr.bf16.mxu0 0
    %1548 = vmatpush1.bf16.msra.mxu0 0
    %1549 = vmatprep.subr.bf16.mxu0 0
    %1550 = vmatpush1.bf16.msra.mxu0 0
    %1551 = vmatprep.subr.bf16.mxu0 0
    %1552 = vmatpush1.bf16.msra.mxu0 0
    %1553 = vmatprep.subr.bf16.mxu0 0
    %1554 = vmatpush1.bf16.msra.mxu0 0
    %1555 = vmatprep.subr.bf16.mxu0 0
    %1556 = vmatpush1.bf16.msra.mxu0 0
    %1557 = vmatprep.subr.bf16.mxu0 0
    %1558 = vmatpush1.bf16.msra.mxu0 0
    %1559 = vmatprep.subr.bf16.mxu0 0
    %1560 = vmatpush1.bf16.msra.mxu0 0
    %1561 = vmatprep.subr.bf16.mxu0 0
    %1562 = vmatpush1.bf16.msra.mxu0 0
    %1563 = vmatprep.subr.bf16.mxu0 0
    %1564 = vmatpush1.bf16.msra.mxu0 0
    %1565 = vmatprep.subr.bf16.mxu0 0
    %1566 = vmatpush1.bf16.msra.mxu0 0
    %1567 = vmatprep.mubr.bf16.mxu0 0
    %1568 = vmatmul.mubr.bf16.gmra.mrb[0].mxu0 %v1533
    %v1569 = vpop.f32.mrb[0].mxu0
    %v1570 = vadd.f32 0.0, %v1569
    %v1571 = vpop.f32.mrb[0].mxu0
    %v1572 = vpop.f32.mrb[0].mxu0
    %v1573 = vpop.f32.mrb[0].mxu0
    %1574 = vdwg.mxu0
    %v1576 = vrot.slane %v1570, 2
    %v1578 = vadd.f32 %v974, %v1576
    %v1579 = vxor.u32 %v1578, 2147483648
    %v1580 = vmul.f32 %v1579, 1.442695
    %v1581 = vpow.pop %v1580
    %v1582 = vadd.f32 %v1581, 1.0
    %v1583 = vrcp.pop %v1582
    %v1584 = vmul.f32 1.0, %v1583
    %v1585 = vtanh.pop %v1578
    %v1587 = vrot.slane %v1520, 6
    %v1589 = vmul.f32 %v1584, %v1587
    %1591 = vrot.lane.b32.xlu0 %v1585, 32
    %v1592 = vpop.permute.xlu0 %1591
    %v1594 = vmul.f32 %v1584, %v1592
    %1596 = vrot.lane.b32.xlu0 %v1594, 32
    %v1597 = vpop.permute.xlu0 %1596
    %v1599 = vadd.f32 %v1589, %v1597
    %v1600 = vtanh.pop %v1599
    %1602 = vrot.lane.b32.xlu0 %v1600, 32
    %v1603 = vpop.permute.xlu0 %1602
    %v1605 = vmul.f32 %v1584, %v1603
    %v1606 = vpack.c.bf16 %v1605, %v1605
    %v1607 = vld [vmem:[%s7] sm:$0xf]
    %v1608 = vld [vmem:[%s7 + $0x4] sm:$0xf]
    %v1609 = vld [vmem:[%s7 + $0x8] sm:$0xf]
    %v1610 = vld [vmem:[%s7 + $0xc] sm:$0xf]
    %v1611 = vld [vmem:[%s8] sm:$0x1]
    %v1613 = vlaneseq
    %v1614 = vshrl.u32 %v1613, 7
    %v1615 = vsub.s32 0, %v1614
    %v1616 = vrot.slane %v1611, %v1615
    %v1619 = vrot.slane %v1606, 3
    %1620 = vrot.lane.b32.xlu0 %v1619, 64
    %v1621 = vpop.permute.xlu0 %1620
    %v1626 = vunpack.c.l.b16 %v1607
    %v1627 = vunpack.c.l.b16 %v1608
    %v1628 = vunpack.c.l.b16 %v1609
    %v1629 = vunpack.c.l.b16 %v1610
    %v1630 = vpack.c.b16 %v1627, %v1626
    %v1631 = vpack.c.b16 %v1629, %v1628
    %v1635 = vsel %vm74, %v1621, 0
    %1637 = vmatprep.subr.bf16.mxu0 0
    %1638 = vmatpush1.bf16.msra.mxu0 %v1630
    %1639 = vmatprep.subr.bf16.mxu0 0
    %1640 = vmatpush1.bf16.msra.mxu0 %v1631
    %1641 = vmatprep.subr.bf16.mxu0 0
    %1642 = vmatpush1.bf16.msra.mxu0 0
    %1643 = vmatprep.subr.bf16.mxu0 0
    %1644 = vmatpush1.bf16.msra.mxu0 0
    %1645 = vmatprep.subr.bf16.mxu0 0
    %1646 = vmatpush1.bf16.msra.mxu0 0
    %1647 = vmatprep.subr.bf16.mxu0 0
    %1648 = vmatpush1.bf16.msra.mxu0 0
    %1649 = vmatprep.subr.bf16.mxu0 0
    %1650 = vmatpush1.bf16.msra.mxu0 0
    %1651 = vmatprep.subr.bf16.mxu0 0
    %1652 = vmatpush1.bf16.msra.mxu0 0
    %1653 = vmatprep.subr.bf16.mxu0 0
    %1654 = vmatpush1.bf16.msra.mxu0 0
    %1655 = vmatprep.subr.bf16.mxu0 0
    %1656 = vmatpush1.bf16.msra.mxu0 0
    %1657 = vmatprep.subr.bf16.mxu0 0
    %1658 = vmatpush1.bf16.msra.mxu0 0
    %1659 = vmatprep.subr.bf16.mxu0 0
    %1660 = vmatpush1.bf16.msra.mxu0 0
    %1661 = vmatprep.subr.bf16.mxu0 0
    %1662 = vmatpush1.bf16.msra.mxu0 0
    %1663 = vmatprep.subr.bf16.mxu0 0
    %1664 = vmatpush1.bf16.msra.mxu0 0
    %1665 = vmatprep.subr.bf16.mxu0 0
    %1666 = vmatpush1.bf16.msra.mxu0 0
    %1667 = vmatprep.subr.bf16.mxu0 0
    %1668 = vmatpush1.bf16.msra.mxu0 0
    %1669 = vmatprep.mubr.bf16.mxu0 0
    %1670 = vmatmul.mubr.bf16.gmra.mrb[0].mxu0 %v1635
    %v1671 = vpop.f32.mrb[0].mxu0
    %v1672 = vadd.f32 %v1616, %v1671
    %v1673 = vpop.f32.mrb[0].mxu0
    %v1674 = vpop.f32.mrb[0].mxu0
    %v1675 = vpop.f32.mrb[0].mxu0
    %1676 = vdwg.mxu0
    %v1677 = vmax.f32 %v1672, 0.0
    %1678 = vst.msk [vmem:[#allocation4] sm:$0x3] %vm207, %v1677
    %v1679 = vld [vmem:[%s9] sm:$0x1]
    %v1681 = vlaneseq
    %v1682 = vshrl.u32 %v1681, 7
    %v1683 = vsub.s32 0, %v1682
    %v1684 = vrot.slane %v1679, %v1683
    %v1686 = vmul.f32 %v1677, %v1684
    %v1687 = vsel %vm207, %v1686, 0.0
    %1688 = vadd.xlane.f32.xlu0 %v1687
    %v1689 = vpop.xlane.xlu0 %1688
    %v1690 = vld [vmem:[#allocation3] sm:$0x1]
    %v1692 = vlaneseq
    %v1693 = vshrl.u32 %v1692, 7
    %v1694 = vsub.s32 0, %v1693
    %v1695 = vrot.slane %v1690, %v1694
    %v1697 = vadd.f32 %v1689, %v1695
    %vm1698 = vcmask 1024
    %1699 = vst.msk [vmem:[%s12] sm:$0x3] %vm1698, %v1697
    // Predicated region
    $region46: #{ef_lstm_forward.1} parent=1 // pred_check
      _
    $region47: #{ef_lstm_forward.1} parent=1 // pred_check_branch
      %1701 = sbr.rel (0) target = $region49
    $region48: #{ef_lstm_forward.1} parent=1 // pred_region
      %s1703 = ssub.s32 32, 32
      %1704 = vsyncadd [#allocation5], %s1703
      %s1706 = sshll.u32 [#allocation4], 4
      %s1707 = int_to_ptr.vmem [resolvable:$true] %s1706
      %1709 = dma.vmem_to_hbm [thread:$0]  %s1707, 32, %s11, [#allocation5]
    $region49: #{ef_lstm_forward.1} parent=1 // pred_fallthru
      _
    // Predicated region
    $region50: #{ef_lstm_forward.1} parent=1 // pred_check
      _
    $region51: #{ef_lstm_forward.1} parent=1 // pred_check_branch
      %1711 = sbr.rel (0) target = $region53
    $region52: #{ef_lstm_forward.1} parent=1 // pred_region
      _
    $region53: #{ef_lstm_forward.1} parent=1 // pred_fallthru
      _
    // Predicated region
    $region54: #{ef_lstm_forward.1} parent=1 // pred_check
      _
    $region55: #{ef_lstm_forward.1} parent=1 // pred_check_branch
      %1713 = sbr.rel (0) target = $region57
    $region56: #{ef_lstm_forward.1} parent=1 // pred_region
      %1714 = dma.done [#allocation5], 32
    $region57: #{ef_lstm_forward.1} parent=1 // pred_fallthru
      _
    // Predicated region
    $region58: #{ef_lstm_forward.1} parent=1 // pred_check
      _
    $region59: #{ef_lstm_forward.1} parent=1 // pred_check_branch
      %1716 = sbr.rel (0) target = $region61
    $region60: #{ef_lstm_forward.1} parent=1 // pred_region
      _
    $region61: #{ef_lstm_forward.1} parent=1 // pred_fallthru
      _
    %1717 = vsyncpa [#allocation5], 1

</llo_original>
